<compile_context>
chip_gen: v5e
topology: v5e:2x2
jax: 0.10.0
libtpu: 0.0.40
codegen_flags: <defaults>
</compile_context>

<pallas_src>
import functools
import math

import jax
import jax.numpy as jnp
from jax import lax
from jax.experimental import pallas as pl
from jax.experimental.pallas import tpu as pltpu


MXU_DTYPE = jnp.bfloat16      # MXU operand dtype; all accumulation stays in float32.


def _leaky(z, slope=0.1):
    return jnp.where(z >= 0, z, slope * z)


# ---------------------------------------------------------------------------
# Kernel 1 (per batch element): TextProjectionHead + single-query MHA context.
# text_gamma == text_beta == attended feature, exactly as in the PyTorch forward.
# ---------------------------------------------------------------------------
def ctx_kernel(num_heads,
               inter_ref, te_ref,
               tw1_ref, tb1_ref, tw2_ref, tb2_ref,
               wq_ref, bq_ref, wkv_ref, bkv_ref, wo_ref, bo_ref,
               g_ref, gt_ref,
               att_ref):
    f32 = jnp.float32
    inter = inter_ref[0]                           # (HW, C)
    HW, C = inter.shape
    head_dim = C // num_heads
    scale = 1.0 / math.sqrt(float(head_dim))

    # TextProjectionHead: Linear -> ReLU -> Linear
    te = te_ref[0]                                 # (1, E)
    h1 = jnp.maximum(jnp.dot(te, tw1_ref[...], preferred_element_type=f32) + tb1_ref[...], 0.0)
    tp = jnp.dot(h1, tw2_ref[...], preferred_element_type=f32) + tb2_ref[...]       # (1, C)

    # MultiheadAttention: query = text_proj (len 1), key = value = flattened inter.
    q = jnp.dot(tp, wq_ref[...], preferred_element_type=f32) + bq_ref[...]          # (1, C)
    kv = jnp.dot(inter, wkv_ref[...], preferred_element_type=f32) + bkv_ref[...]    # (HW, 2C)
    k = kv[:, :C]
    v = kv[:, C:]

    scores = jnp.dot(k * q, g_ref[...], preferred_element_type=f32) * scale         # (HW, nh)
    smax = jnp.max(scores, axis=0, keepdims=True)
    e = jnp.exp(scores - smax)
    attn = e * pl.reciprocal(jnp.sum(e, axis=0, keepdims=True), approx=True)         # softmax over keys
    attn_full = jnp.dot(attn, gt_ref[...], preferred_element_type=f32)               # (HW, C)
    ctx = jnp.sum(attn_full * v, axis=0, keepdims=True)                              # (1, C)
    att = jnp.dot(ctx, wo_ref[...], preferred_element_type=f32) + bo_ref[...]        # (1, C)
    att_ref[0] = att.astype(att_ref.dtype)


# ---------------------------------------------------------------------------
# Kernel 2 (per batch x per spatial tile): DCN path + SFT image path + combine.
# ---------------------------------------------------------------------------
def dgm_kernel(H, W, K, TQ,
               x_ref, inter_ref, xfull_ref, cat_ref, att_ref,
               wom_ref, bom_ref, wdcn_ref, wgb1_ref, wgb2_ref,
               out_ref):
    f32 = jnp.float32
    pad = (K - 1) // 2
    KK = K * K
    HW = H * W
    GUARD = pad * W + pad
    C = x_ref.shape[2]
    C2 = 2 * C

    r0 = pl.program_id(1) * TQ                                  # first flat pixel of this tile

    x_t = x_ref[0]                                              # (TQ, C) f32
    inter_t = inter_ref[0]                                      # (TQ, C) bf16
    x_all = xfull_ref[0]                                        # (HW, C) bf16 (gather RHS)
    att = att_ref[0]                                            # (1, C)  f32

    # per-pixel integer coordinates (computed in-kernel, no DMA'd coordinate table)
    p = r0 + lax.broadcasted_iota(jnp.int32, (TQ, 1), 0)        # flat pixel index
    py = p // W
    px = p - py * W

    # ---- offset / mask KxK conv over cat(x, inter): sum over taps of shifted, masked
    #      (TQ, 2C) x (2C, 3KK) matmuls against the fused [off_y | off_x | mask] weight.
    om = jnp.zeros((TQ, 3 * KK), f32)
    for t in range(KK):
        dy = t // K - pad
        dx = t % K - pad
        start = GUARD + r0 + dy * W + dx                        # always in-bounds (flat zero guard)
        src = cat_ref[0, pl.ds(start, TQ), :]                   # (TQ, 2C) bf16
        valid = ((py + dy >= 0) & (py + dy < H) &
                 (px + dx >= 0) & (px + dx < W))                # (TQ, 1) bool
        src_m = jnp.where(valid, src, jnp.zeros((), src.dtype))
        om += jnp.dot(src_m, wom_ref[t * C2:(t + 1) * C2, :],
                      preferred_element_type=f32)
    om += bom_ref[...]
    off_y = om[:, 0:KK]
    off_x = om[:, KK:2 * KK]
    mask = pl.reciprocal(1.0 + jnp.exp(-om[:, 2 * KK:3 * KK]), approx=True)   # sigmoid, (TQ, KK)

    # ---- modulated deformable sampling + deformable-conv weights
    base_y = py.astype(f32)
    base_x = px.astype(f32)
    col_ids = lax.broadcasted_iota(jnp.int32, (TQ, HW), 1)
    dcn = jnp.zeros((TQ, C), f32)
    for t in range(KK):
        dy = t // K - pad
        dx = t % K - pad
        yy = base_y + float(dy) + off_y[:, t:t + 1]
        xx = base_x + float(dx) + off_x[:, t:t + 1]
        y0f = jnp.floor(yy)
        x0f = jnp.floor(xx)
        fy = yy - y0f
        fx = xx - x0f
        y0 = y0f.astype(jnp.int32)
        x0 = x0f.astype(jnp.int32)
        # corner validity (zero padding outside the image)
        vy0 = ((y0 >= 0) & (y0 < H)).astype(f32)
        vy1 = ((y0 >= -1) & (y0 < H - 1)).astype(f32)
        vx0 = ((x0 >= 0) & (x0 < W)).astype(f32)
        vx1 = ((x0 >= -1) & (x0 < W - 1)).astype(f32)
        # modulation mask folded into the (TQ, 1) bilinear corner weights
        mt = mask[:, t:t + 1]
        w00 = (1.0 - fy) * (1.0 - fx) * vy0 * vx0 * mt
        w01 = (1.0 - fy) * fx * vy0 * vx1 * mt
        w10 = fy * (1.0 - fx) * vy1 * vx0 * mt
        w11 = fy * fx * vy1 * vx1 * mt
        # one VALU compare for the (y0, x0) corner; other corners via XLU rolls.
        idx0 = jnp.mod(y0 * W + x0, HW)                          # wrap so rolls stay consistent
        oh00 = (col_ids == idx0).astype(f32)                     # (TQ, HW)
        oh01 = pltpu.roll(oh00, shift=1, axis=1)                 # (y0, x0+1)
        oh10 = pltpu.roll(oh00, shift=W, axis=1)                 # (y0+1, x0)
        oh11 = pltpu.roll(oh00, shift=W + 1, axis=1)             # (y0+1, x0+1)
        S = oh00 * w00 + oh01 * w01 + oh10 * w10 + oh11 * w11    # modulated bilinear gather matrix
        sampled = jnp.dot(S.astype(MXU_DTYPE), x_all, preferred_element_type=f32)   # (TQ, C)
        dcn += jnp.dot(sampled.astype(MXU_DTYPE), wdcn_ref[t * C:(t + 1) * C, :],
                       preferred_element_type=f32)

    # ---- SFT image path: fused 1x1-conv chains (gamma | beta)
    h = _leaky(jnp.dot(inter_t, wgb1_ref[...], preferred_element_type=f32))
    gb = jnp.dot(h.astype(MXU_DTYPE), wgb2_ref[...], preferred_element_type=f32)    # (TQ, 2C)
    img_gamma = gb[:, :C]
    img_beta = gb[:, C:]

    # ---- combine: out = x + dcn_out + (x * (img_gamma + text_gamma) + img_beta + text_beta)
    sft = x_t * (img_gamma + att) + (img_beta + att)
    out_ref[0] = (x_t + dcn + sft).astype(out_ref.dtype)


def init_params(key, C, E, K, num_heads):
    KK = K * K
    keys = iter(jax.random.split(key, 24))

    def nrm(shape, scale):
        return jax.random.normal(next(keys), shape, jnp.float32) * scale

    p = {}
    # DCN_layer: conv_offset_mask (3*KK, 2C, K, K) + bias, main weight (C, C, K, K)
    p["w_offmask"] = nrm((3 * KK, 2 * C, K, K), 0.02)
    p["b_offmask"] = nrm((3 * KK,), 0.02)
    p["w_dcn"] = nrm((C, C, K, K), 1.0 / math.sqrt(C * KK))
    # SFT 1x1 convs (bias=False)
    for name in ("wg1", "wg2", "wb1", "wb2"):
        p[name] = nrm((C, C, 1, 1), 1.0 / math.sqrt(C))
    # TextProjectionHead
    p["tw1"], p["tb1"] = nrm((C, E), 1.0 / math.sqrt(E)), nrm((C,), 0.02)
    p["tw2"], p["tb2"] = nrm((C, C), 1.0 / math.sqrt(C)), nrm((C,), 0.02)
    # MultiheadAttention (in_proj split into q/k/v, plus out_proj)
    for name in ("wq", "wk", "wv", "wo"):
        p[name] = nrm((C, C), 1.0 / math.sqrt(C))
    for name in ("bq", "bk", "bv", "bo"):
        p[name] = nrm((C,), 0.02)
    return p


def dgm_forward(x, inter, text_embed, params, kernel_size=3, num_heads=8, tile_q=128):
    B, C, H, W = x.shape
    assert inter.shape == (B, C, H, W)
    assert C % num_heads == 0
    K = kernel_size
    pad = (K - 1) // 2
    KK = K * K
    HW = H * W
    E = text_embed.shape[1]
    TQ = min(tile_q, HW)
    assert HW % TQ == 0 and TQ % 8 == 0
    NT = HW // TQ
    GUARD = pad * W + pad
    f32 = jnp.float32

    # ----- glue: NCHW -> (B, HW, C) -----
    def to_flat(a):
        return a.transpose(0, 2, 3, 1).reshape(B, HW, C).astype(f32)

    x_flat = to_flat(x)
    inter_flat = to_flat(inter)
    x_full = x_flat.astype(MXU_DTYPE)                      # bf16 gather RHS (DMA'd once per batch)
    inter_bf = inter_flat.astype(MXU_DTYPE)                # bf16 SFT input tiles
    # flat zero-guarded concat(x, inter) so KxK halo slices are always in-bounds;
    # stored in bf16 (only feeds bf16 MXU matmuls) to halve its HBM/VMEM footprint.
    cat_pad = jnp.pad(jnp.concatenate([x_flat, inter_flat], axis=-1).astype(MXU_DTYPE),
                      ((0, 0), (GUARD, GUARD), (0, 0)))

    # ----- glue: parameters in matmul-ready layouts -----
    wom = params["w_offmask"].transpose(2, 3, 1, 0).reshape(KK * 2 * C, 3 * KK).astype(MXU_DTYPE)
    bom = params["b_offmask"].reshape(1, 3 * KK).astype(f32)
    wdcn = params["w_dcn"].transpose(2, 3, 1, 0).reshape(KK * C, C).astype(MXU_DTYPE)

    wg1 = params["wg1"][:, :, 0, 0].T
    wb1 = params["wb1"][:, :, 0, 0].T
    wg2 = params["wg2"][:, :, 0, 0].T
    wb2 = params["wb2"][:, :, 0, 0].T
    wgb1 = jnp.concatenate([wg1, wb1], axis=1).astype(MXU_DTYPE)              # (C, 2C)
    wgb2 = (jnp.zeros((2 * C, 2 * C), f32)
            .at[:C, :C].set(wg2).at[C:, C:].set(wb2)).astype(MXU_DTYPE)       # block-diag (2C, 2C)

    tw1 = params["tw1"].T
    tb1 = params["tb1"].reshape(1, C)
    tw2 = params["tw2"].T
    tb2 = params["tb2"].reshape(1, C)
    wq = params["wq"].T
    bq = params["bq"].reshape(1, C)
    wkv = jnp.concatenate([params["wk"].T, params["wv"].T], axis=1)           # (C, 2C)
    bkv = jnp.concatenate([params["bk"], params["bv"]]).reshape(1, 2 * C)
    wo = params["wo"].T
    bo = params["bo"].reshape(1, C)

    head_dim = C // num_heads
    G = (jnp.arange(C)[:, None] // head_dim == jnp.arange(num_heads)[None, :]).astype(f32)
    GT = G.T

    te3 = text_embed.astype(f32).reshape(B, 1, E)

    # ----- kernel 1: per-batch attention context (tiny, linear in HW) -----
    ctx_weights = (tw1, tb1, tw2, tb2, wq, bq, wkv, bkv, wo, bo, G, GT)
    att = pl.pallas_call(
        functools.partial(ctx_kernel, num_heads),
        out_shape=jax.ShapeDtypeStruct((B, 1, C), f32),
        grid_spec=pltpu.PrefetchScalarGridSpec(
            num_scalar_prefetch=0,
            grid=(B,),
            in_specs=[pl.BlockSpec((1, HW, C), lambda b: (b, 0, 0)),
                      pl.BlockSpec((1, 1, E), lambda b: (b, 0, 0))]
                     + [pl.BlockSpec(w.shape, lambda b: (0, 0)) for w in ctx_weights],
            out_specs=pl.BlockSpec((1, 1, C), lambda b: (b, 0, 0)),
        ),
        compiler_params=pltpu.CompilerParams(
            dimension_semantics=("parallel",),
            vmem_limit_bytes=32 * 1024 * 1024),
    )(inter_flat, te3, *ctx_weights)

    # ----- kernel 2: tiled DCN + SFT + residual combine -----
    weight_args = (wom, bom, wdcn, wgb1, wgb2)
    out_flat = pl.pallas_call(
        functools.partial(dgm_kernel, H, W, K, TQ),
        out_shape=jax.ShapeDtypeStruct((B, HW, C), f32),
        grid_spec=pltpu.PrefetchScalarGridSpec(
            num_scalar_prefetch=0,
            grid=(B, NT),
            in_specs=[pl.BlockSpec((1, TQ, C), lambda b, t: (b, t, 0)),                 # x tile (f32)
                      pl.BlockSpec((1, TQ, C), lambda b, t: (b, t, 0)),                 # inter tile (bf16)
                      pl.BlockSpec((1, HW, C), lambda b, t: (b, 0, 0)),                 # full x (bf16)
                      pl.BlockSpec((1, HW + 2 * GUARD, 2 * C), lambda b, t: (b, 0, 0)),  # guarded cat (bf16)
                      pl.BlockSpec((1, 1, C), lambda b, t: (b, 0, 0))]                  # attention ctx
                     + [pl.BlockSpec(w.shape, lambda b, t: (0, 0)) for w in weight_args],
            out_specs=pl.BlockSpec((1, TQ, C), lambda b, t: (b, t, 0)),
        ),
        compiler_params=pltpu.CompilerParams(
            dimension_semantics=("parallel", "parallel"),
            vmem_limit_bytes=32 * 1024 * 1024),
    )(x_flat, inter_bf, x_full, cat_pad, att, *weight_args)

    # ----- glue: (B, HW, C) -> NCHW -----
    return out_flat.reshape(B, H, W, C).transpose(0, 3, 1, 2)


if __name__ == "__main__":
    key = jax.random.PRNGKey(0)
    B, C, H, W = 2, 16, 16, 16        # channels_in == channels_out (residual add)
    E = 64                            # synthetic stand-in for CLIP text_embed_dim
    K = 3
    num_heads = 8

    k1, k2, k3, k4 = jax.random.split(key, 4)
    x = jax.random.normal(k1, (B, C, H, W), jnp.float32)
    inter = jax.random.normal(k2, (B, C, H, W), jnp.float32)
    text_embed = jax.random.normal(k3, (B, E), jnp.float32)
    params = init_params(k4, C, E, K, num_heads)

    out = dgm_forward(x, inter, text_embed, params, kernel_size=K,
                      num_heads=num_heads, tile_q=128)
    out = jax.block_until_ready(out)
    assert out.shape == (B, C, H, W)
    assert bool(jnp.all(jnp.isfinite(out)))
    print("KERNEL_OK")
</pallas_src>

<mosaic_0001>
module attributes {stable_mosaic.version = 11 : i64} {
  func.func @ctx_kernel(%arg0: i32, %arg1: memref<1x256x16xf32, #tpu.memory_space<vmem>>, %arg2: memref<1x1x64xf32, #tpu.memory_space<vmem>>, %arg3: memref<64x16xf32, #tpu.memory_space<vmem>>, %arg4: memref<1x16xf32, #tpu.memory_space<vmem>>, %arg5: memref<16x16xf32, #tpu.memory_space<vmem>>, %arg6: memref<1x16xf32, #tpu.memory_space<vmem>>, %arg7: memref<16x16xf32, #tpu.memory_space<vmem>>, %arg8: memref<1x16xf32, #tpu.memory_space<vmem>>, %arg9: memref<16x32xf32, #tpu.memory_space<vmem>>, %arg10: memref<1x32xf32, #tpu.memory_space<vmem>>, %arg11: memref<16x16xf32, #tpu.memory_space<vmem>>, %arg12: memref<1x16xf32, #tpu.memory_space<vmem>>, %arg13: memref<16x8xf32, #tpu.memory_space<vmem>>, %arg14: memref<8x16xf32, #tpu.memory_space<vmem>>, %arg15: memref<1x1x16xf32, #tpu.memory_space<vmem>>) attributes {dimension_semantics = [#tpu.dimension_semantics<parallel>], iteration_bounds = array<i64: 2>, scalar_prefetch = 0 : i64, scratch_operands = 0 : i64, tpu.core_type = #tpu.core_type<tc>, window_params = [{transform_indices = @transform_0, window_bounds = array<i64: 1, 256, 16>}, {transform_indices = @transform_1, window_bounds = array<i64: 1, 1, 64>}, {pipeline_mode = #tpu.pipeline_mode<synchronous>, transform_indices = @transform_2, window_bounds = array<i64: 64, 16>}, {pipeline_mode = #tpu.pipeline_mode<synchronous>, transform_indices = @transform_3, window_bounds = array<i64: 1, 16>}, {pipeline_mode = #tpu.pipeline_mode<synchronous>, transform_indices = @transform_4, window_bounds = array<i64: 16, 16>}, {pipeline_mode = #tpu.pipeline_mode<synchronous>, transform_indices = @transform_5, window_bounds = array<i64: 1, 16>}, {pipeline_mode = #tpu.pipeline_mode<synchronous>, transform_indices = @transform_6, window_bounds = array<i64: 16, 16>}, {pipeline_mode = #tpu.pipeline_mode<synchronous>, transform_indices = @transform_7, window_bounds = array<i64: 1, 16>}, {pipeline_mode = #tpu.pipeline_mode<synchronous>, transform_indices = @transform_8, window_bounds = array<i64: 16, 32>}, {pipeline_mode = #tpu.pipeline_mode<synchronous>, transform_indices = @transform_9, window_bounds = array<i64: 1, 32>}, {pipeline_mode = #tpu.pipeline_mode<synchronous>, transform_indices = @transform_10, window_bounds = array<i64: 16, 16>}, {pipeline_mode = #tpu.pipeline_mode<synchronous>, transform_indices = @transform_11, window_bounds = array<i64: 1, 16>}, {pipeline_mode = #tpu.pipeline_mode<synchronous>, transform_indices = @transform_12, window_bounds = array<i64: 16, 8>}, {pipeline_mode = #tpu.pipeline_mode<synchronous>, transform_indices = @transform_13, window_bounds = array<i64: 8, 16>}, {transform_indices = @transform_14, window_bounds = array<i64: 1, 1, 16>}]} {
    %c0 = arith.constant 0 : index
    %c0_0 = arith.constant 0 : index
    %c0_1 = arith.constant 0 : index
    %0 = vector.load %arg1[%c0, %c0_0, %c0_1] : memref<1x256x16xf32, #tpu.memory_space<vmem>>, vector<1x256x16xf32>
    %1 = vector.shape_cast %0 : vector<1x256x16xf32> to vector<256x16xf32>
    %c0_2 = arith.constant 0 : index
    %c0_3 = arith.constant 0 : index
    %c0_4 = arith.constant 0 : index
    %2 = vector.load %arg2[%c0_2, %c0_3, %c0_4] : memref<1x1x64xf32, #tpu.memory_space<vmem>>, vector<1x1x64xf32>
    %3 = vector.shape_cast %2 : vector<1x1x64xf32> to vector<1x64xf32>
    %c0_5 = arith.constant 0 : index
    %c0_6 = arith.constant 0 : index
    %4 = vector.load %arg3[%c0_5, %c0_6] : memref<64x16xf32, #tpu.memory_space<vmem>>, vector<64x16xf32>
    %cst = arith.constant dense<0.000000e+00> : vector<1x16xf32>
    %5 = tpu.matmul %3, %4, %cst {dimension_numbers = #tpu.dot_dimension_numbers<[1], [0], [0], [1], [0, 0, 1, 1], [], []>} : vector<1x64xf32>, vector<64x16xf32>, vector<1x16xf32> -> vector<1x16xf32>
    %c0_7 = arith.constant 0 : index
    %c0_8 = arith.constant 0 : index
    %6 = vector.load %arg4[%c0_7, %c0_8] : memref<1x16xf32, #tpu.memory_space<vmem>>, vector<1x16xf32>
    %7 = arith.addf %5, %6 : vector<1x16xf32>
    %cst_9 = arith.constant 0.000000e+00 : f32
    %8 = vector.broadcast %cst_9 : f32 to vector<1x16xf32>
    %9 = arith.maximumf %7, %8 : vector<1x16xf32>
    %c0_10 = arith.constant 0 : index
    %c0_11 = arith.constant 0 : index
    %10 = vector.load %arg5[%c0_10, %c0_11] : memref<16x16xf32, #tpu.memory_space<vmem>>, vector<16x16xf32>
    %cst_12 = arith.constant dense<0.000000e+00> : vector<1x16xf32>
    %11 = tpu.matmul %9, %10, %cst_12 {dimension_numbers = #tpu.dot_dimension_numbers<[1], [0], [0], [1], [0, 0, 1, 1], [], []>} : vector<1x16xf32>, vector<16x16xf32>, vector<1x16xf32> -> vector<1x16xf32>
    %c0_13 = arith.constant 0 : index
    %c0_14 = arith.constant 0 : index
    %12 = vector.load %arg6[%c0_13, %c0_14] : memref<1x16xf32, #tpu.memory_space<vmem>>, vector<1x16xf32>
    %13 = arith.addf %11, %12 : vector<1x16xf32>
    %c0_15 = arith.constant 0 : index
    %c0_16 = arith.constant 0 : index
    %14 = vector.load %arg7[%c0_15, %c0_16] : memref<16x16xf32, #tpu.memory_space<vmem>>, vector<16x16xf32>
    %cst_17 = arith.constant dense<0.000000e+00> : vector<1x16xf32>
    %15 = tpu.matmul %13, %14, %cst_17 {dimension_numbers = #tpu.dot_dimension_numbers<[1], [0], [0], [1], [0, 0, 1, 1], [], []>} : vector<1x16xf32>, vector<16x16xf32>, vector<1x16xf32> -> vector<1x16xf32>
    %c0_18 = arith.constant 0 : index
    %c0_19 = arith.constant 0 : index
    %16 = vector.load %arg8[%c0_18, %c0_19] : memref<1x16xf32, #tpu.memory_space<vmem>>, vector<1x16xf32>
    %17 = arith.addf %15, %16 : vector<1x16xf32>
    %c0_20 = arith.constant 0 : index
    %c0_21 = arith.constant 0 : index
    %18 = vector.load %arg9[%c0_20, %c0_21] : memref<16x32xf32, #tpu.memory_space<vmem>>, vector<16x32xf32>
    %cst_22 = arith.constant dense<0.000000e+00> : vector<256x32xf32>
    %19 = tpu.matmul %1, %18, %cst_22 {dimension_numbers = #tpu.dot_dimension_numbers<[1], [0], [0], [1], [0, 0, 1, 1], [], []>} : vector<256x16xf32>, vector<16x32xf32>, vector<256x32xf32> -> vector<256x32xf32>
    %c0_23 = arith.constant 0 : index
    %c0_24 = arith.constant 0 : index
    %20 = vector.load %arg10[%c0_23, %c0_24] : memref<1x32xf32, #tpu.memory_space<vmem>>, vector<1x32xf32>
    %21 = vector.broadcast %20 : vector<1x32xf32> to vector<256x32xf32>
    %22 = arith.addf %19, %21 : vector<256x32xf32>
    %23 = vector.extract_strided_slice %22 {offsets = [0, 0], sizes = [256, 16], strides = [1, 1]} : vector<256x32xf32> to vector<256x16xf32>
    %24 = vector.extract_strided_slice %22 {offsets = [0, 16], sizes = [256, 16], strides = [1, 1]} : vector<256x32xf32> to vector<256x16xf32>
    %25 = vector.broadcast %17 : vector<1x16xf32> to vector<256x16xf32>
    %26 = arith.mulf %23, %25 : vector<256x16xf32>
    %c0_25 = arith.constant 0 : index
    %c0_26 = arith.constant 0 : index
    %27 = vector.load %arg13[%c0_25, %c0_26] : memref<16x8xf32, #tpu.memory_space<vmem>>, vector<16x8xf32>
    %cst_27 = arith.constant dense<0.000000e+00> : vector<256x8xf32>
    %28 = tpu.matmul %26, %27, %cst_27 {dimension_numbers = #tpu.dot_dimension_numbers<[1], [0], [0], [1], [0, 0, 1, 1], [], []>} : vector<256x16xf32>, vector<16x8xf32>, vector<256x8xf32> -> vector<256x8xf32>
    %cst_28 = arith.constant 0.707106769 : f32
    %29 = vector.broadcast %cst_28 : f32 to vector<256x8xf32>
    %30 = arith.mulf %28, %29 : vector<256x8xf32>
    %cst_29 = arith.constant dense<0xFF800000> : vector<8xf32>
    %31 = vector.multi_reduction <maximumf>, %30, %cst_29 [0] : vector<256x8xf32> to vector<8xf32>
    %32 = vector.shape_cast %31 : vector<8xf32> to vector<1x8xf32>
    %33 = vector.broadcast %32 : vector<1x8xf32> to vector<256x8xf32>
    %34 = arith.subf %30, %33 : vector<256x8xf32>
    %35 = math.exp %34 : vector<256x8xf32>
    %cst_30 = arith.constant dense<0.000000e+00> : vector<8xf32>
    %36 = vector.multi_reduction <add>, %35, %cst_30 [0] : vector<256x8xf32> to vector<8xf32>
    %37 = vector.shape_cast %36 : vector<8xf32> to vector<1x8xf32>
    %38 = tpu.reciprocal %37 {approx = true} : vector<1x8xf32> -> vector<1x8xf32>
    %39 = vector.broadcast %38 : vector<1x8xf32> to vector<256x8xf32>
    %40 = arith.mulf %35, %39 : vector<256x8xf32>
    %c0_31 = arith.constant 0 : index
    %c0_32 = arith.constant 0 : index
    %41 = vector.load %arg14[%c0_31, %c0_32] : memref<8x16xf32, #tpu.memory_space<vmem>>, vector<8x16xf32>
    %cst_33 = arith.constant dense<0.000000e+00> : vector<256x16xf32>
    %42 = tpu.matmul %40, %41, %cst_33 {dimension_numbers = #tpu.dot_dimension_numbers<[1], [0], [0], [1], [0, 0, 1, 1], [], []>} : vector<256x8xf32>, vector<8x16xf32>, vector<256x16xf32> -> vector<256x16xf32>
    %43 = arith.mulf %42, %24 : vector<256x16xf32>
    %cst_34 = arith.constant dense<0.000000e+00> : vector<16xf32>
    %44 = vector.multi_reduction <add>, %43, %cst_34 [0] : vector<256x16xf32> to vector<16xf32>
    %45 = vector.shape_cast %44 : vector<16xf32> to vector<1x16xf32>
    %c0_35 = arith.constant 0 : index
    %c0_36 = arith.constant 0 : index
    %46 = vector.load %arg11[%c0_35, %c0_36] : memref<16x16xf32, #tpu.memory_space<vmem>>, vector<16x16xf32>
    %cst_37 = arith.constant dense<0.000000e+00> : vector<1x16xf32>
    %47 = tpu.matmul %45, %46, %cst_37 {dimension_numbers = #tpu.dot_dimension_numbers<[1], [0], [0], [1], [0, 0, 1, 1], [], []>} : vector<1x16xf32>, vector<16x16xf32>, vector<1x16xf32> -> vector<1x16xf32>
    %c0_38 = arith.constant 0 : index
    %c0_39 = arith.constant 0 : index
    %48 = vector.load %arg12[%c0_38, %c0_39] : memref<1x16xf32, #tpu.memory_space<vmem>>, vector<1x16xf32>
    %49 = arith.addf %47, %48 : vector<1x16xf32>
    %c0_40 = arith.constant 0 : index
    %c0_41 = arith.constant 0 : index
    %c0_42 = arith.constant 0 : index
    %50 = vector.load %arg15[%c0_40, %c0_41, %c0_42] : memref<1x1x16xf32, #tpu.memory_space<vmem>>, vector<1x1x16xf32>
    %51 = vector.shape_cast %50 : vector<1x1x16xf32> to vector<1x16xf32>
    %52 = vector.shape_cast %49 : vector<1x16xf32> to vector<1x1x16xf32>
    tpu.vector_store %arg15[%c0_40, %c0_41, %c0_42], %52 {strides = array<i32>} : memref<1x1x16xf32, #tpu.memory_space<vmem>>, vector<1x1x16xf32>,
    return
  }
  func.func @transform_0(%arg0: i32) -> (i32, i32, i32) {
    %c0_i32 = arith.constant 0 : i32
    %c0_i32_0 = arith.constant 0 : i32
    %c0_i32_1 = arith.constant 0 : i32
    return %arg0, %c0_i32, %c0_i32_0 : i32, i32, i32
  }
  func.func @transform_1(%arg0: i32) -> (i32, i32, i32) {
    %c0_i32 = arith.constant 0 : i32
    %c0_i32_0 = arith.constant 0 : i32
    %c0_i32_1 = arith.constant 0 : i32
    return %arg0, %c0_i32, %c0_i32_0 : i32, i32, i32
  }
  func.func @transform_2(%arg0: i32) -> (i32, i32) {
    %c0_i32 = arith.constant 0 : i32
    %c0_i32_0 = arith.constant 0 : i32
    %c0_i32_1 = arith.constant 0 : i32
    return %c0_i32, %c0_i32_0 : i32, i32
  }
  func.func @transform_3(%arg0: i32) -> (i32, i32) {
    %c0_i32 = arith.constant 0 : i32
    %c0_i32_0 = arith.constant 0 : i32
    %c0_i32_1 = arith.constant 0 : i32
    return %c0_i32, %c0_i32_0 : i32, i32
  }
  func.func @transform_4(%arg0: i32) -> (i32, i32) {
    %c0_i32 = arith.constant 0 : i32
    %c0_i32_0 = arith.constant 0 : i32
    %c0_i32_1 = arith.constant 0 : i32
    return %c0_i32, %c0_i32_0 : i32, i32
  }
  func.func @transform_5(%arg0: i32) -> (i32, i32) {
    %c0_i32 = arith.constant 0 : i32
    %c0_i32_0 = arith.constant 0 : i32
    %c0_i32_1 = arith.constant 0 : i32
    return %c0_i32, %c0_i32_0 : i32, i32
  }
  func.func @transform_6(%arg0: i32) -> (i32, i32) {
    %c0_i32 = arith.constant 0 : i32
    %c0_i32_0 = arith.constant 0 : i32
    %c0_i32_1 = arith.constant 0 : i32
    return %c0_i32, %c0_i32_0 : i32, i32
  }
  func.func @transform_7(%arg0: i32) -> (i32, i32) {
    %c0_i32 = arith.constant 0 : i32
    %c0_i32_0 = arith.constant 0 : i32
    %c0_i32_1 = arith.constant 0 : i32
    return %c0_i32, %c0_i32_0 : i32, i32
  }
  func.func @transform_8(%arg0: i32) -> (i32, i32) {
    %c0_i32 = arith.constant 0 : i32
    %c0_i32_0 = arith.constant 0 : i32
    %c0_i32_1 = arith.constant 0 : i32
    return %c0_i32, %c0_i32_0 : i32, i32
  }
  func.func @transform_9(%arg0: i32) -> (i32, i32) {
    %c0_i32 = arith.constant 0 : i32
    %c0_i32_0 = arith.constant 0 : i32
    %c0_i32_1 = arith.constant 0 : i32
    return %c0_i32, %c0_i32_0 : i32, i32
  }
  func.func @transform_10(%arg0: i32) -> (i32, i32) {
    %c0_i32 = arith.constant 0 : i32
    %c0_i32_0 = arith.constant 0 : i32
    %c0_i32_1 = arith.constant 0 : i32
    return %c0_i32, %c0_i32_0 : i32, i32
  }
  func.func @transform_11(%arg0: i32) -> (i32, i32) {
    %c0_i32 = arith.constant 0 : i32
    %c0_i32_0 = arith.constant 0 : i32
    %c0_i32_1 = arith.constant 0 : i32
    return %c0_i32, %c0_i32_0 : i32, i32
  }
  func.func @transform_12(%arg0: i32) -> (i32, i32) {
    %c0_i32 = arith.constant 0 : i32
    %c0_i32_0 = arith.constant 0 : i32
    %c0_i32_1 = arith.constant 0 : i32
    return %c0_i32, %c0_i32_0 : i32, i32
  }
  func.func @transform_13(%arg0: i32) -> (i32, i32) {
    %c0_i32 = arith.constant 0 : i32
    %c0_i32_0 = arith.constant 0 : i32
    %c0_i32_1 = arith.constant 0 : i32
    return %c0_i32, %c0_i32_0 : i32, i32
  }
  func.func @transform_14(%arg0: i32) -> (i32, i32, i32) {
    %c0_i32 = arith.constant 0 : i32
    %c0_i32_0 = arith.constant 0 : i32
    %c0_i32_1 = arith.constant 0 : i32
    return %arg0, %c0_i32, %c0_i32_0 : i32, i32, i32
  }
}

</mosaic_0001>

<llo_original>
// kernel: tpu_custom_call.1
$region0: #{tpu_custom_call.1}
  #allocation0 [shape = 'u32[]', space=smem, size = 0x4, offset = 0x4, fixed_abs, tag = 'smem constant byte address 0x4 - core index']
  #allocation1 [shape = 'u32[72,128]{1,0:T(1,128)}', space=vmem, size = 0x9000, scoped, tag = 'internal scratch']
  %s0 = inlined_call_operand.vmem [shape: f32[2,256,16], index: 0, kind: input, shape index: {}]
  %s1 = inlined_call_operand.vmem [shape: f32[2,1,64], index: 1, kind: input, shape index: {}]
  %s2 = inlined_call_operand.vmem [shape: f32[64,16], index: 2, kind: input, shape index: {}]
  %s3 = inlined_call_operand.vmem [shape: f32[1,16], index: 3, kind: input, shape index: {}]
  %s4 = inlined_call_operand.vmem [shape: f32[16,16], index: 4, kind: input, shape index: {}]
  %s5 = inlined_call_operand.vmem [shape: f32[1,16], index: 5, kind: input, shape index: {}]
  %s6 = inlined_call_operand.vmem [shape: f32[16,16], index: 6, kind: input, shape index: {}]
  %s7 = inlined_call_operand.vmem [shape: f32[1,16], index: 7, kind: input, shape index: {}]
  %s8 = inlined_call_operand.vmem [shape: f32[16,32], index: 8, kind: input, shape index: {}]
  %s9 = inlined_call_operand.vmem [shape: f32[1,32], index: 9, kind: input, shape index: {}]
  %s10 = inlined_call_operand.vmem [shape: f32[16,16], index: 10, kind: input, shape index: {}]
  %s11 = inlined_call_operand.vmem [shape: f32[1,16], index: 11, kind: input, shape index: {}]
  %s12 = inlined_call_operand.vmem [shape: f32[16,8], index: 12, kind: input, shape index: {}]
  %s13 = inlined_call_operand.vmem [shape: f32[8,16], index: 13, kind: input, shape index: {}]
  %s14 = inlined_call_operand.hbm [shape: f32[2,1,16], index: 14, kind: output, shape index: {}]
  %s15 = sld [smem:[#allocation0]]
  $region89: #{tpu_custom_call.1} parent=0
    _
  %s17 = ssub.s32 1, %s15
  %s18 = scalar_select 0, %s17, %s15
  $region1: #{tpu_custom_call.1} parent=0
    #allocation2 [shape = 'u8[1024]{0}', space=vmem, size = 0x400, scoped, tag = 'output window, operand 0']
    #allocation3 [shape = 's32[2]{0}', space=sflag, size = 0x8, scoped, tag = 'scoped memory for tpu_custom_call.1']
    %19 = vsyncpa [#allocation3], 0
    %s20 = scalar_lea.sflag [#allocation3], 1
    %21 = vsyncpa %s20, 0
    loop: start=0, step=1, limit=4
    $region2: #{tpu_custom_call.1} parent=1 // loop_pre_header
      _
    $region3: #{tpu_custom_call.1} parent=1 // loop_header
      %s23 = sphi 0, %s27
      %p24 = scmp.ge.s32.totalorder %s23, 4
      %s33 = sphi 0, %s35
      %s36 = sphi 0, %s33
      %s37 = sphi 0, %s36
      %s53 = sphi 0, %s37
      %s59 = sphi 0, %s61
      %s62 = sphi 0, %s59
      %s63 = sphi 0, %s62
      %s79 = sphi 0, %s63
      %s83 = sphi 0, %s83
      %s85 = sphi 0, %s83
      %s86 = sphi 0, %s85
      %s100 = sphi 0, %s86
      %s104 = sphi 0, %s104
      %s106 = sphi 0, %s104
      %s107 = sphi 0, %s106
      %s121 = sphi 0, %s107
      %s125 = sphi 0, %s125
      %s127 = sphi 0, %s125
      %s128 = sphi 0, %s127
      %s142 = sphi 0, %s128
      %s146 = sphi 0, %s146
      %s148 = sphi 0, %s146
      %s149 = sphi 0, %s148
      %s163 = sphi 0, %s149
      %s167 = sphi 0, %s167
      %s169 = sphi 0, %s167
      %s170 = sphi 0, %s169
      %s184 = sphi 0, %s170
      %s188 = sphi 0, %s188
      %s190 = sphi 0, %s188
      %s191 = sphi 0, %s190
      %s205 = sphi 0, %s191
      %s209 = sphi 0, %s209
      %s211 = sphi 0, %s209
      %s212 = sphi 0, %s211
      %s226 = sphi 0, %s212
      %s230 = sphi 0, %s230
      %s232 = sphi 0, %s230
      %s233 = sphi 0, %s232
      %s247 = sphi 0, %s233
      %s251 = sphi 0, %s251
      %s253 = sphi 0, %s251
      %s254 = sphi 0, %s253
      %s268 = sphi 0, %s254
      %s272 = sphi 0, %s272
      %s274 = sphi 0, %s272
      %s275 = sphi 0, %s274
      %s289 = sphi 0, %s275
      %s293 = sphi 0, %s293
      %s295 = sphi 0, %s293
      %s296 = sphi 0, %s295
      %s310 = sphi 0, %s296
      %s314 = sphi 0, %s314
      %s316 = sphi 0, %s314
      %s317 = sphi 0, %s316
      %s331 = sphi 0, %s317
      %s337 = sphi 0, %s339
      %s340 = sphi 0, %s337
      %s341 = sphi 0, %s340
      %s357 = sphi 0, %s341
    $region4: #{tpu_custom_call.1} parent=1 // loop_header_branch
      %26 = sbr.rel (%p24) target = $region8
    $region5: #{tpu_custom_call.1} parent=1 // loop_body
      %s28 = ssub.s32 %s23, 1
      %s29 = ssub.s32 %s23, 2
      %s30 = sadd.s32 %s23, 1
      %s31 = ssub.s32 %s23, %s30
      %p32 = scmp.eq.s32.totalorder %s31, 0
      %s34 = sadd.s32 %s33, 1
      %s35 = scalar_select %p32, %s33, %s34
      %p38 = pneg %p32
      %p39 = scmp.eq.s32.totalorder %s23, 1
      %p40 = por %p38, %p39
      %p41 = scmp.ne.s32.totalorder %s33, %s36
      %p42 = scmp.eq.s32.totalorder %s23, 0
      %p43 = por %p41, %p42
      %p44 = scmp.ne.s32.totalorder %s33, %s36
      %p45 = scmp.eq.s32.totalorder %s28, 1
      %p46 = por %p44, %p45
      %p47 = scmp.ne.s32.totalorder %s36, %s37
      %p48 = scmp.eq.s32.totalorder %s28, 0
      %p49 = por %p47, %p48
      %p50 = scmp.ne.s32.totalorder %s36, %s37
      %p51 = scmp.eq.s32.totalorder %s29, 1
      %p52 = por %p50, %p51
      %p54 = scmp.ne.s32.totalorder %s37, %s53
      %p55 = scmp.eq.s32.totalorder %s29, 0
      %p56 = por %p54, %p55
      %s57 = ssub.s32 %s23, %s30
      %p58 = scmp.eq.s32.totalorder %s57, 0
      %s60 = sadd.s32 %s59, 1
      %s61 = scalar_select %p58, %s59, %s60
      %p64 = pneg %p58
      %p65 = scmp.eq.s32.totalorder %s23, 1
      %p66 = por %p64, %p65
      %p67 = scmp.ne.s32.totalorder %s59, %s62
      %p68 = scmp.eq.s32.totalorder %s23, 0
      %p69 = por %p67, %p68
      %p70 = scmp.ne.s32.totalorder %s59, %s62
      %p71 = scmp.eq.s32.totalorder %s28, 1
      %p72 = por %p70, %p71
      %p73 = scmp.ne.s32.totalorder %s62, %s63
      %p74 = scmp.eq.s32.totalorder %s28, 0
      %p75 = por %p73, %p74
      %p76 = scmp.ne.s32.totalorder %s62, %s63
      %p77 = scmp.eq.s32.totalorder %s29, 1
      %p78 = por %p76, %p77
      %p80 = scmp.ne.s32.totalorder %s63, %s79
      %p81 = scmp.eq.s32.totalorder %s29, 0
      %p82 = por %p80, %p81
      %s84 = sadd.s32 %s83, 1
      %p87 = scmp.eq.s32.totalorder %s23, 1
      %p88 = scmp.ne.s32.totalorder %s83, %s85
      %p89 = scmp.eq.s32.totalorder %s23, 0
      %p90 = por %p88, %p89
      %p91 = scmp.ne.s32.totalorder %s83, %s85
      %p92 = scmp.eq.s32.totalorder %s28, 1
      %p93 = por %p91, %p92
      %p94 = scmp.ne.s32.totalorder %s85, %s86
      %p95 = scmp.eq.s32.totalorder %s28, 0
      %p96 = por %p94, %p95
      %p97 = scmp.ne.s32.totalorder %s85, %s86
      %p98 = scmp.eq.s32.totalorder %s29, 1
      %p99 = por %p97, %p98
      %p101 = scmp.ne.s32.totalorder %s86, %s100
      %p102 = scmp.eq.s32.totalorder %s29, 0
      %p103 = por %p101, %p102
      %s105 = sadd.s32 %s104, 1
      %p108 = scmp.eq.s32.totalorder %s23, 1
      %p109 = scmp.ne.s32.totalorder %s104, %s106
      %p110 = scmp.eq.s32.totalorder %s23, 0
      %p111 = por %p109, %p110
      %p112 = scmp.ne.s32.totalorder %s104, %s106
      %p113 = scmp.eq.s32.totalorder %s28, 1
      %p114 = por %p112, %p113
      %p115 = scmp.ne.s32.totalorder %s106, %s107
      %p116 = scmp.eq.s32.totalorder %s28, 0
      %p117 = por %p115, %p116
      %p118 = scmp.ne.s32.totalorder %s106, %s107
      %p119 = scmp.eq.s32.totalorder %s29, 1
      %p120 = por %p118, %p119
      %p122 = scmp.ne.s32.totalorder %s107, %s121
      %p123 = scmp.eq.s32.totalorder %s29, 0
      %p124 = por %p122, %p123
      %s126 = sadd.s32 %s125, 1
      %p129 = scmp.eq.s32.totalorder %s23, 1
      %p130 = scmp.ne.s32.totalorder %s125, %s127
      %p131 = scmp.eq.s32.totalorder %s23, 0
      %p132 = por %p130, %p131
      %p133 = scmp.ne.s32.totalorder %s125, %s127
      %p134 = scmp.eq.s32.totalorder %s28, 1
      %p135 = por %p133, %p134
      %p136 = scmp.ne.s32.totalorder %s127, %s128
      %p137 = scmp.eq.s32.totalorder %s28, 0
      %p138 = por %p136, %p137
      %p139 = scmp.ne.s32.totalorder %s127, %s128
      %p140 = scmp.eq.s32.totalorder %s29, 1
      %p141 = por %p139, %p140
      %p143 = scmp.ne.s32.totalorder %s128, %s142
      %p144 = scmp.eq.s32.totalorder %s29, 0
      %p145 = por %p143, %p144
      %s147 = sadd.s32 %s146, 1
      %p150 = scmp.eq.s32.totalorder %s23, 1
      %p151 = scmp.ne.s32.totalorder %s146, %s148
      %p152 = scmp.eq.s32.totalorder %s23, 0
      %p153 = por %p151, %p152
      %p154 = scmp.ne.s32.totalorder %s146, %s148
      %p155 = scmp.eq.s32.totalorder %s28, 1
      %p156 = por %p154, %p155
      %p157 = scmp.ne.s32.totalorder %s148, %s149
      %p158 = scmp.eq.s32.totalorder %s28, 0
      %p159 = por %p157, %p158
      %p160 = scmp.ne.s32.totalorder %s148, %s149
      %p161 = scmp.eq.s32.totalorder %s29, 1
      %p162 = por %p160, %p161
      %p164 = scmp.ne.s32.totalorder %s149, %s163
      %p165 = scmp.eq.s32.totalorder %s29, 0
      %p166 = por %p164, %p165
      %s168 = sadd.s32 %s167, 1
      %p171 = scmp.eq.s32.totalorder %s23, 1
      %p172 = scmp.ne.s32.totalorder %s167, %s169
      %p173 = scmp.eq.s32.totalorder %s23, 0
      %p174 = por %p172, %p173
      %p175 = scmp.ne.s32.totalorder %s167, %s169
      %p176 = scmp.eq.s32.totalorder %s28, 1
      %p177 = por %p175, %p176
      %p178 = scmp.ne.s32.totalorder %s169, %s170
      %p179 = scmp.eq.s32.totalorder %s28, 0
      %p180 = por %p178, %p179
      %p181 = scmp.ne.s32.totalorder %s169, %s170
      %p182 = scmp.eq.s32.totalorder %s29, 1
      %p183 = por %p181, %p182
      %p185 = scmp.ne.s32.totalorder %s170, %s184
      %p186 = scmp.eq.s32.totalorder %s29, 0
      %p187 = por %p185, %p186
      %s189 = sadd.s32 %s188, 1
      %p192 = scmp.eq.s32.totalorder %s23, 1
      %p193 = scmp.ne.s32.totalorder %s188, %s190
      %p194 = scmp.eq.s32.totalorder %s23, 0
      %p195 = por %p193, %p194
      %p196 = scmp.ne.s32.totalorder %s188, %s190
      %p197 = scmp.eq.s32.totalorder %s28, 1
      %p198 = por %p196, %p197
      %p199 = scmp.ne.s32.totalorder %s190, %s191
      %p200 = scmp.eq.s32.totalorder %s28, 0
      %p201 = por %p199, %p200
      %p202 = scmp.ne.s32.totalorder %s190, %s191
      %p203 = scmp.eq.s32.totalorder %s29, 1
      %p204 = por %p202, %p203
      %p206 = scmp.ne.s32.totalorder %s191, %s205
      %p207 = scmp.eq.s32.totalorder %s29, 0
      %p208 = por %p206, %p207
      %s210 = sadd.s32 %s209, 1
      %p213 = scmp.eq.s32.totalorder %s23, 1
      %p214 = scmp.ne.s32.totalorder %s209, %s211
      %p215 = scmp.eq.s32.totalorder %s23, 0
      %p216 = por %p214, %p215
      %p217 = scmp.ne.s32.totalorder %s209, %s211
      %p218 = scmp.eq.s32.totalorder %s28, 1
      %p219 = por %p217, %p218
      %p220 = scmp.ne.s32.totalorder %s211, %s212
      %p221 = scmp.eq.s32.totalorder %s28, 0
      %p222 = por %p220, %p221
      %p223 = scmp.ne.s32.totalorder %s211, %s212
      %p224 = scmp.eq.s32.totalorder %s29, 1
      %p225 = por %p223, %p224
      %p227 = scmp.ne.s32.totalorder %s212, %s226
      %p228 = scmp.eq.s32.totalorder %s29, 0
      %p229 = por %p227, %p228
      %s231 = sadd.s32 %s230, 1
      %p234 = scmp.eq.s32.totalorder %s23, 1
      %p235 = scmp.ne.s32.totalorder %s230, %s232
      %p236 = scmp.eq.s32.totalorder %s23, 0
      %p237 = por %p235, %p236
      %p238 = scmp.ne.s32.totalorder %s230, %s232
      %p239 = scmp.eq.s32.totalorder %s28, 1
      %p240 = por %p238, %p239
      %p241 = scmp.ne.s32.totalorder %s232, %s233
      %p242 = scmp.eq.s32.totalorder %s28, 0
      %p243 = por %p241, %p242
      %p244 = scmp.ne.s32.totalorder %s232, %s233
      %p245 = scmp.eq.s32.totalorder %s29, 1
      %p246 = por %p244, %p245
      %p248 = scmp.ne.s32.totalorder %s233, %s247
      %p249 = scmp.eq.s32.totalorder %s29, 0
      %p250 = por %p248, %p249
      %s252 = sadd.s32 %s251, 1
      %p255 = scmp.eq.s32.totalorder %s23, 1
      %p256 = scmp.ne.s32.totalorder %s251, %s253
      %p257 = scmp.eq.s32.totalorder %s23, 0
      %p258 = por %p256, %p257
      %p259 = scmp.ne.s32.totalorder %s251, %s253
      %p260 = scmp.eq.s32.totalorder %s28, 1
      %p261 = por %p259, %p260
      %p262 = scmp.ne.s32.totalorder %s253, %s254
      %p263 = scmp.eq.s32.totalorder %s28, 0
      %p264 = por %p262, %p263
      %p265 = scmp.ne.s32.totalorder %s253, %s254
      %p266 = scmp.eq.s32.totalorder %s29, 1
      %p267 = por %p265, %p266
      %p269 = scmp.ne.s32.totalorder %s254, %s268
      %p270 = scmp.eq.s32.totalorder %s29, 0
      %p271 = por %p269, %p270
      %s273 = sadd.s32 %s272, 1
      %p276 = scmp.eq.s32.totalorder %s23, 1
      %p277 = scmp.ne.s32.totalorder %s272, %s274
      %p278 = scmp.eq.s32.totalorder %s23, 0
      %p279 = por %p277, %p278
      %p280 = scmp.ne.s32.totalorder %s272, %s274
      %p281 = scmp.eq.s32.totalorder %s28, 1
      %p282 = por %p280, %p281
      %p283 = scmp.ne.s32.totalorder %s274, %s275
      %p284 = scmp.eq.s32.totalorder %s28, 0
      %p285 = por %p283, %p284
      %p286 = scmp.ne.s32.totalorder %s274, %s275
      %p287 = scmp.eq.s32.totalorder %s29, 1
      %p288 = por %p286, %p287
      %p290 = scmp.ne.s32.totalorder %s275, %s289
      %p291 = scmp.eq.s32.totalorder %s29, 0
      %p292 = por %p290, %p291
      %s294 = sadd.s32 %s293, 1
      %p297 = scmp.eq.s32.totalorder %s23, 1
      %p298 = scmp.ne.s32.totalorder %s293, %s295
      %p299 = scmp.eq.s32.totalorder %s23, 0
      %p300 = por %p298, %p299
      %p301 = scmp.ne.s32.totalorder %s293, %s295
      %p302 = scmp.eq.s32.totalorder %s28, 1
      %p303 = por %p301, %p302
      %p304 = scmp.ne.s32.totalorder %s295, %s296
      %p305 = scmp.eq.s32.totalorder %s28, 0
      %p306 = por %p304, %p305
      %p307 = scmp.ne.s32.totalorder %s295, %s296
      %p308 = scmp.eq.s32.totalorder %s29, 1
      %p309 = por %p307, %p308
      %p311 = scmp.ne.s32.totalorder %s296, %s310
      %p312 = scmp.eq.s32.totalorder %s29, 0
      %p313 = por %p311, %p312
      %s315 = sadd.s32 %s314, 1
      %p318 = scmp.eq.s32.totalorder %s23, 1
      %p319 = scmp.ne.s32.totalorder %s314, %s316
      %p320 = scmp.eq.s32.totalorder %s23, 0
      %p321 = por %p319, %p320
      %p322 = scmp.ne.s32.totalorder %s314, %s316
      %p323 = scmp.eq.s32.totalorder %s28, 1
      %p324 = por %p322, %p323
      %p325 = scmp.ne.s32.totalorder %s316, %s317
      %p326 = scmp.eq.s32.totalorder %s28, 0
      %p327 = por %p325, %p326
      %p328 = scmp.ne.s32.totalorder %s316, %s317
      %p329 = scmp.eq.s32.totalorder %s29, 1
      %p330 = por %p328, %p329
      %p332 = scmp.ne.s32.totalorder %s317, %s331
      %p333 = scmp.eq.s32.totalorder %s29, 0
      %p334 = por %p332, %p333
      %s335 = ssub.s32 %s23, %s30
      %p336 = scmp.eq.s32.totalorder %s335, 0
      %s338 = sadd.s32 %s337, 1
      %s339 = scalar_select %p336, %s337, %s338
      %p342 = pneg %p336
      %p343 = scmp.eq.s32.totalorder %s23, 1
      %p344 = por %p342, %p343
      %p345 = scmp.ne.s32.totalorder %s337, %s340
      %p346 = scmp.eq.s32.totalorder %s23, 0
      %p347 = por %p345, %p346
      %p348 = scmp.ne.s32.totalorder %s337, %s340
      %p349 = scmp.eq.s32.totalorder %s28, 1
      %p350 = por %p348, %p349
      %p351 = scmp.ne.s32.totalorder %s340, %s341
      %p352 = scmp.eq.s32.totalorder %s28, 0
      %p353 = por %p351, %p352
      %p354 = scmp.ne.s32.totalorder %s340, %s341
      %p355 = scmp.eq.s32.totalorder %s29, 1
      %p356 = por %p354, %p355
      %p358 = scmp.ne.s32.totalorder %s341, %s357
      %p359 = scmp.eq.s32.totalorder %s29, 0
      %p360 = por %p358, %p359
      %p361 = scmp.le.s32.totalorder 1, %s23
      %p362 = scmp.lt.s32.totalorder %s23, 3
      %p363 = pnand %p361, %p362
      %p364 = pneg %p363
      // Predicated region
      $region9: #{tpu_custom_call.1} parent=5 // pred_check
        _
      $region10: #{tpu_custom_call.1} parent=5 // pred_check_branch
        %366 = sbr.rel (%p363) target = $region12
      $region11: #{tpu_custom_call.1} parent=5 // pred_region
        %s367 = ssub.s32 %s23, 1
        // Predicated region
        $region13: #{tpu_custom_call.1} parent=11 // pred_check
          %p368 = pneg %p96
        $region14: #{tpu_custom_call.1} parent=11 // pred_check_branch
          %370 = sbr.rel (%p368) target = $region16
        $region15: #{tpu_custom_call.1} parent=11 // pred_region
          _
        $region16: #{tpu_custom_call.1} parent=11 // pred_fallthru
          _
        // Predicated region
        $region17: #{tpu_custom_call.1} parent=11 // pred_check
          %p371 = pneg %p117
        $region18: #{tpu_custom_call.1} parent=11 // pred_check_branch
          %373 = sbr.rel (%p371) target = $region20
        $region19: #{tpu_custom_call.1} parent=11 // pred_region
          _
        $region20: #{tpu_custom_call.1} parent=11 // pred_fallthru
          _
        // Predicated region
        $region21: #{tpu_custom_call.1} parent=11 // pred_check
          %p374 = pneg %p138
        $region22: #{tpu_custom_call.1} parent=11 // pred_check_branch
          %376 = sbr.rel (%p374) target = $region24
        $region23: #{tpu_custom_call.1} parent=11 // pred_region
          _
        $region24: #{tpu_custom_call.1} parent=11 // pred_fallthru
          _
        // Predicated region
        $region25: #{tpu_custom_call.1} parent=11 // pred_check
          %p377 = pneg %p159
        $region26: #{tpu_custom_call.1} parent=11 // pred_check_branch
          %379 = sbr.rel (%p377) target = $region28
        $region27: #{tpu_custom_call.1} parent=11 // pred_region
          _
        $region28: #{tpu_custom_call.1} parent=11 // pred_fallthru
          _
        // Predicated region
        $region29: #{tpu_custom_call.1} parent=11 // pred_check
          %p380 = pneg %p180
        $region30: #{tpu_custom_call.1} parent=11 // pred_check_branch
          %382 = sbr.rel (%p380) target = $region32
        $region31: #{tpu_custom_call.1} parent=11 // pred_region
          _
        $region32: #{tpu_custom_call.1} parent=11 // pred_fallthru
          _
        // Predicated region
        $region33: #{tpu_custom_call.1} parent=11 // pred_check
          %p383 = pneg %p201
        $region34: #{tpu_custom_call.1} parent=11 // pred_check_branch
          %385 = sbr.rel (%p383) target = $region36
        $region35: #{tpu_custom_call.1} parent=11 // pred_region
          _
        $region36: #{tpu_custom_call.1} parent=11 // pred_fallthru
          _
        // Predicated region
        $region37: #{tpu_custom_call.1} parent=11 // pred_check
          %p386 = pneg %p222
        $region38: #{tpu_custom_call.1} parent=11 // pred_check_branch
          %388 = sbr.rel (%p386) target = $region40
        $region39: #{tpu_custom_call.1} parent=11 // pred_region
          _
        $region40: #{tpu_custom_call.1} parent=11 // pred_fallthru
          _
        // Predicated region
        $region41: #{tpu_custom_call.1} parent=11 // pred_check
          %p389 = pneg %p243
        $region42: #{tpu_custom_call.1} parent=11 // pred_check_branch
          %391 = sbr.rel (%p389) target = $region44
        $region43: #{tpu_custom_call.1} parent=11 // pred_region
          _
        $region44: #{tpu_custom_call.1} parent=11 // pred_fallthru
          _
        // Predicated region
        $region45: #{tpu_custom_call.1} parent=11 // pred_check
          %p392 = pneg %p264
        $region46: #{tpu_custom_call.1} parent=11 // pred_check_branch
          %394 = sbr.rel (%p392) target = $region48
        $region47: #{tpu_custom_call.1} parent=11 // pred_region
          _
        $region48: #{tpu_custom_call.1} parent=11 // pred_fallthru
          _
        // Predicated region
        $region49: #{tpu_custom_call.1} parent=11 // pred_check
          %p395 = pneg %p285
        $region50: #{tpu_custom_call.1} parent=11 // pred_check_branch
          %397 = sbr.rel (%p395) target = $region52
        $region51: #{tpu_custom_call.1} parent=11 // pred_region
          _
        $region52: #{tpu_custom_call.1} parent=11 // pred_fallthru
          _
        // Predicated region
        $region53: #{tpu_custom_call.1} parent=11 // pred_check
          %p398 = pneg %p306
        $region54: #{tpu_custom_call.1} parent=11 // pred_check_branch
          %400 = sbr.rel (%p398) target = $region56
        $region55: #{tpu_custom_call.1} parent=11 // pred_region
          _
        $region56: #{tpu_custom_call.1} parent=11 // pred_fallthru
          _
        // Predicated region
        $region57: #{tpu_custom_call.1} parent=11 // pred_check
          %p401 = pneg %p327
        $region58: #{tpu_custom_call.1} parent=11 // pred_check_branch
          %403 = sbr.rel (%p401) target = $region60
        $region59: #{tpu_custom_call.1} parent=11 // pred_region
          _
        $region60: #{tpu_custom_call.1} parent=11 // pred_fallthru
          _
      $region12: #{tpu_custom_call.1} parent=5 // pred_fallthru
        _
      %p404 = scmp.lt.s32.totalorder %s23, 2
      // Predicated region
      $region61: #{tpu_custom_call.1} parent=5 // pred_check
        %p405 = pneg %p404
      $region62: #{tpu_custom_call.1} parent=5 // pred_check_branch
        %407 = sbr.rel (%p405) target = $region64
      $region63: #{tpu_custom_call.1} parent=5 // pred_region
        // Predicated region
        $region65: #{tpu_custom_call.1} parent=63 // pred_check
          %p408 = pneg %p43
        $region66: #{tpu_custom_call.1} parent=63 // pred_check_branch
          %410 = sbr.rel (%p408) target = $region68
        $region67: #{tpu_custom_call.1} parent=63 // pred_region
          %p411 = scmp.lt.s32.totalorder %s23, 1
          %s412 = scalar_select %p411, %s23, 1
          %s413 = smul.addr %s412, 32
          %s414 = smul.addr %s413, 8
          %s415 = scalar_lea.vmem %s0, %s414
        $region68: #{tpu_custom_call.1} parent=63 // pred_fallthru
          _
        // Predicated region
        $region69: #{tpu_custom_call.1} parent=63 // pred_check
          %p416 = pneg %p69
        $region70: #{tpu_custom_call.1} parent=63 // pred_check_branch
          %418 = sbr.rel (%p416) target = $region72
        $region71: #{tpu_custom_call.1} parent=63 // pred_region
          %p419 = scmp.lt.s32.totalorder %s23, 1
          %s420 = scalar_select %p419, %s23, 1
          %s421 = scalar_lea.vmem %s1, %s420
        $region72: #{tpu_custom_call.1} parent=63 // pred_fallthru
          _
      $region64: #{tpu_custom_call.1} parent=5 // pred_fallthru
        _
      %p422 = scmp.le.s32.totalorder 1, %s23
      %p423 = scmp.lt.s32.totalorder %s23, 3
      %p424 = pnand %p422, %p423
      %p425 = pneg %p424
      // Predicated region
      $region73: #{tpu_custom_call.1} parent=5 // pred_check
        _
      $region74: #{tpu_custom_call.1} parent=5 // pred_check_branch
        %427 = sbr.rel (%p424) target = $region76
      $region75: #{tpu_custom_call.1} parent=5 // pred_region
        %s428 = ssub.s32 %s23, 1
        %p429 = scmp.lt.s32.totalorder %s28, 1
        %s430 = scalar_select %p429, %s28, 1
        %s431 = smul.addr %s430, 32
        %s432 = smul.addr %s431, 8
        %s433 = scalar_lea.vmem %s0, %s432
        %p434 = pneg %p49
        %p435 = pneg %p46
        %p436 = scmp.lt.s32.totalorder %s28, 1
        %s437 = scalar_select %p436, %s28, 1
        %s438 = scalar_lea.vmem %s1, %s437
        %p439 = pneg %p75
        %p440 = pneg %p72
        %p441 = pneg %p96
        %p442 = pneg %p93
        %p443 = pneg %p117
        %p444 = pneg %p114
        %p445 = pneg %p138
        %p446 = pneg %p135
        %p447 = pneg %p159
        %p448 = pneg %p156
        %p449 = pneg %p180
        %p450 = pneg %p177
        %p451 = pneg %p201
        %p452 = pneg %p198
        %p453 = pneg %p222
        %p454 = pneg %p219
        %p455 = pneg %p243
        %p456 = pneg %p240
        %p457 = pneg %p264
        %p458 = pneg %p261
        %p459 = pneg %p285
        %p460 = pneg %p282
        %p461 = pneg %p306
        %p462 = pneg %p303
        %p463 = pneg %p327
        %p464 = pneg %p324
        %p465 = pneg %p353
        %p466 = pneg %p350
        %s467 = sand.u32 %s340, 1
        %s468 = scalar_lea.sflag [#allocation3], %s467
        %s469 = sand.u32 %s340, 1
        %s470 = scalar_lea.vmem [#allocation2], %s469
        %p471 = scmp.lt.s32.totalorder %s28, 1
        %s472 = scalar_select %p471, %s28, 1
        %s473 = smul.addr %s472, 32
        %s474 = smul.addr %s473, 8
        %s475 = scalar_lea.vmem %s0, %s474
        %p476 = scmp.lt.s32.totalorder %s28, 1
        %s477 = scalar_select %p476, %s28, 1
        %s478 = scalar_lea.vmem %s1, %s477
        %v479 = vld [vmem:[%s475] sm:$0xff]
        %v480 = vld [vmem:[%s475 + $0x8] sm:$0xff]
        %v481 = vld [vmem:[%s475 + $0x10] sm:$0xff]
        %v482 = vld [vmem:[%s475 + $0x18] sm:$0xff]
        %v483 = vld [vmem:[%s475 + $0x20] sm:$0xff]
        %v484 = vld [vmem:[%s475 + $0x28] sm:$0xff]
        %v485 = vld [vmem:[%s475 + $0x30] sm:$0xff]
        %v486 = vld [vmem:[%s475 + $0x38] sm:$0xff]
        %v487 = vld [vmem:[%s475 + $0x40] sm:$0xff]
        %v488 = vld [vmem:[%s475 + $0x48] sm:$0xff]
        %v489 = vld [vmem:[%s475 + $0x50] sm:$0xff]
        %v490 = vld [vmem:[%s475 + $0x58] sm:$0xff]
        %v491 = vld [vmem:[%s475 + $0x60] sm:$0xff]
        %v492 = vld [vmem:[%s475 + $0x68] sm:$0xff]
        %v493 = vld [vmem:[%s475 + $0x70] sm:$0xff]
        %v494 = vld [vmem:[%s475 + $0x78] sm:$0xff]
        %v495 = vld [vmem:[%s475 + $0x80] sm:$0xff]
        %v496 = vld [vmem:[%s475 + $0x88] sm:$0xff]
        %v497 = vld [vmem:[%s475 + $0x90] sm:$0xff]
        %v498 = vld [vmem:[%s475 + $0x98] sm:$0xff]
        %v499 = vld [vmem:[%s475 + $0xa0] sm:$0xff]
        %v500 = vld [vmem:[%s475 + $0xa8] sm:$0xff]
        %v501 = vld [vmem:[%s475 + $0xb0] sm:$0xff]
        %v502 = vld [vmem:[%s475 + $0xb8] sm:$0xff]
        %v503 = vld [vmem:[%s475 + $0xc0] sm:$0xff]
        %v504 = vld [vmem:[%s475 + $0xc8] sm:$0xff]
        %v505 = vld [vmem:[%s475 + $0xd0] sm:$0xff]
        %v506 = vld [vmem:[%s475 + $0xd8] sm:$0xff]
        %v507 = vld [vmem:[%s475 + $0xe0] sm:$0xff]
        %v508 = vld [vmem:[%s475 + $0xe8] sm:$0xff]
        %v509 = vld [vmem:[%s475 + $0xf0] sm:$0xff]
        %v510 = vld [vmem:[%s475 + $0xf8] sm:$0xff]
        %v511 = vld [vmem:[%s478] sm:$0x1]
        %v512 = vld [vmem:[%s2] sm:$0xff]
        %v513 = vld [vmem:[%s2 + $0x8] sm:$0xff]
        %v514 = vld [vmem:[%s2 + $0x10] sm:$0xff]
        %v515 = vld [vmem:[%s2 + $0x18] sm:$0xff]
        %v516 = vld [vmem:[%s2 + $0x20] sm:$0xff]
        %v517 = vld [vmem:[%s2 + $0x28] sm:$0xff]
        %v518 = vld [vmem:[%s2 + $0x30] sm:$0xff]
        %v519 = vld [vmem:[%s2 + $0x38] sm:$0xff]
        %v520 = vld [vmem:[%s3] sm:$0x1]
        %vm521 = vcmask 523264
        %v523 = vsel %vm521, %v511, 0
        %525 = vmatpush.msra.mxu0 0.0
        %526 = vmatpush.msra.mxu0 0.0
        %527 = vmatpush.msra.mxu0 0.0
        %528 = vmatpush.msra.mxu0 0.0
        %529 = vmatpush.msra.mxu0 0.0
        %530 = vmatpush.msra.mxu0 0.0
        %531 = vmatpush.msra.mxu0 0.0
        %532 = vmatpush.msra.mxu0 0.0
        %533 = vmatpush.msra.mxu0 %v519
        %534 = vmatpush.msra.mxu0 %v518
        %535 = vmatpush.msra.mxu0 %v517
        %536 = vmatpush.msra.mxu0 %v516
        %537 = vmatpush.msra.mxu0 %v515
        %538 = vmatpush.msra.mxu0 %v514
        %539 = vmatpush.msra.mxu0 %v513
        %540 = vmatpush.msra.mxu0 %v512
        %541 = vmatmul.f32.gmra.mxu0 %v523
        %v542 = vpop.f32.mrf.mxu0
        %v543 = vadd.f32 %v520, %v542
        %544 = vdwg.mxu0
        %v545 = vmax.f32 %v543, 0.0
        %v546 = vld [vmem:[%s4] sm:$0xff]
        %v547 = vld [vmem:[%s4 + $0x8] sm:$0xff]
        %v548 = vld [vmem:[%s5] sm:$0x1]
        %vm549 = vcmask 130048
        %v551 = vsel %vm549, %v545, 0
        %553 = vmatpush.msra.mxu0 0.0
        %554 = vmatpush.msra.mxu0 0.0
        %555 = vmatpush.msra.mxu0 0.0
        %556 = vmatpush.msra.mxu0 0.0
        %557 = vmatpush.msra.mxu0 0.0
        %558 = vmatpush.msra.mxu0 0.0
        %559 = vmatpush.msra.mxu0 0.0
        %560 = vmatpush.msra.mxu0 0.0
        %561 = vmatpush.msra.mxu0 0.0
        %562 = vmatpush.msra.mxu0 0.0
        %563 = vmatpush.msra.mxu0 0.0
        %564 = vmatpush.msra.mxu0 0.0
        %565 = vmatpush.msra.mxu0 0.0
        %566 = vmatpush.msra.mxu0 0.0
        %567 = vmatpush.msra.mxu0 %v547
        %568 = vmatpush.msra.mxu0 %v546
        %569 = vmatmul.f32.gmra.mxu0 %v551
        %v570 = vpop.f32.mrf.mxu0
        %v571 = vadd.f32 %v548, %v570
        %572 = vdwg.mxu0
        %v573 = vld [vmem:[%s6] sm:$0xff]
        %v574 = vld [vmem:[%s6 + $0x8] sm:$0xff]
        %v575 = vld [vmem:[%s7] sm:$0x1]
        %v577 = vsel %vm549, %v571, 0
        %579 = vmatpush.msra.mxu0 0.0
        %580 = vmatpush.msra.mxu0 0.0
        %581 = vmatpush.msra.mxu0 0.0
        %582 = vmatpush.msra.mxu0 0.0
        %583 = vmatpush.msra.mxu0 0.0
        %584 = vmatpush.msra.mxu0 0.0
        %585 = vmatpush.msra.mxu0 0.0
        %586 = vmatpush.msra.mxu0 0.0
        %587 = vmatpush.msra.mxu0 0.0
        %588 = vmatpush.msra.mxu0 0.0
        %589 = vmatpush.msra.mxu0 0.0
        %590 = vmatpush.msra.mxu0 0.0
        %591 = vmatpush.msra.mxu0 0.0
        %592 = vmatpush.msra.mxu0 0.0
        %593 = vmatpush.msra.mxu0 %v574
        %594 = vmatpush.msra.mxu0 %v573
        %595 = vmatmul.f32.gmra.mxu0 %v577
        %v596 = vpop.f32.mrf.mxu0
        %v597 = vadd.f32 %v575, %v596
        %598 = vdwg.mxu0
        %v599 = vld [vmem:[%s8] sm:$0xff]
        %v600 = vld [vmem:[%s8 + $0x8] sm:$0xff]
        %v601 = vld [vmem:[%s9] sm:$0x1]
        %v603 = vperm.slane %v601, 0
        %v606 = vsel %vm549, %v479, 0
        %v609 = vsel %vm549, %v480, 0
        %v612 = vsel %vm549, %v481, 0
        %v615 = vsel %vm549, %v482, 0
        %v618 = vsel %vm549, %v483, 0
        %v621 = vsel %vm549, %v484, 0
        %v624 = vsel %vm549, %v485, 0
        %v627 = vsel %vm549, %v486, 0
        %v630 = vsel %vm549, %v487, 0
        %v633 = vsel %vm549, %v488, 0
        %v636 = vsel %vm549, %v489, 0
        %v639 = vsel %vm549, %v490, 0
        %v642 = vsel %vm549, %v491, 0
        %v645 = vsel %vm549, %v492, 0
        %v648 = vsel %vm549, %v493, 0
        %v651 = vsel %vm549, %v494, 0
        %v654 = vsel %vm549, %v495, 0
        %v657 = vsel %vm549, %v496, 0
        %v660 = vsel %vm549, %v497, 0
        %v663 = vsel %vm549, %v498, 0
        %v666 = vsel %vm549, %v499, 0
        %v669 = vsel %vm549, %v500, 0
        %v672 = vsel %vm549, %v501, 0
        %v675 = vsel %vm549, %v502, 0
        %v678 = vsel %vm549, %v503, 0
        %v681 = vsel %vm549, %v504, 0
        %v684 = vsel %vm549, %v505, 0
        %v687 = vsel %vm549, %v506, 0
        %v690 = vsel %vm549, %v507, 0
        %v693 = vsel %vm549, %v508, 0
        %v696 = vsel %vm549, %v509, 0
        %v699 = vsel %vm549, %v510, 0
        %701 = vmatpush.msra.mxu0 0.0
        %702 = vmatpush.msra.mxu0 0.0
        %703 = vmatpush.msra.mxu0 0.0
        %704 = vmatpush.msra.mxu0 0.0
        %705 = vmatpush.msra.mxu0 0.0
        %706 = vmatpush.msra.mxu0 0.0
        %707 = vmatpush.msra.mxu0 0.0
        %708 = vmatpush.msra.mxu0 0.0
        %709 = vmatpush.msra.mxu0 0.0
        %710 = vmatpush.msra.mxu0 0.0
        %711 = vmatpush.msra.mxu0 0.0
        %712 = vmatpush.msra.mxu0 0.0
        %713 = vmatpush.msra.mxu0 0.0
        %714 = vmatpush.msra.mxu0 0.0
        %715 = vmatpush.msra.mxu0 %v600
        %716 = vmatpush.msra.mxu0 %v599
        %717 = vmatmul.f32.gmra.mxu0 %v606
        %v718 = vpop.f32.mrf.mxu0
        %v719 = vadd.f32 %v603, %v718
        %720 = vmatmul.f32.gmra.mxu0 %v609
        %v721 = vpop.f32.mrf.mxu0
        %v722 = vadd.f32 %v603, %v721
        %723 = vmatmul.f32.gmra.mxu0 %v612
        %v724 = vpop.f32.mrf.mxu0
        %v725 = vadd.f32 %v603, %v724
        %726 = vmatmul.f32.gmra.mxu0 %v615
        %v727 = vpop.f32.mrf.mxu0
        %v728 = vadd.f32 %v603, %v727
        %729 = vmatmul.f32.gmra.mxu0 %v618
        %v730 = vpop.f32.mrf.mxu0
        %v731 = vadd.f32 %v603, %v730
        %732 = vmatmul.f32.gmra.mxu0 %v621
        %v733 = vpop.f32.mrf.mxu0
        %v734 = vadd.f32 %v603, %v733
        %735 = vmatmul.f32.gmra.mxu0 %v624
        %v736 = vpop.f32.mrf.mxu0
        %v737 = vadd.f32 %v603, %v736
        %738 = vmatmul.f32.gmra.mxu0 %v627
        %v739 = vpop.f32.mrf.mxu0
        %v740 = vadd.f32 %v603, %v739
        %741 = vmatmul.f32.gmra.mxu0 %v630
        %v742 = vpop.f32.mrf.mxu0
        %v743 = vadd.f32 %v603, %v742
        %744 = vmatmul.f32.gmra.mxu0 %v633
        %v745 = vpop.f32.mrf.mxu0
        %v746 = vadd.f32 %v603, %v745
        %747 = vmatmul.f32.gmra.mxu0 %v636
        %v748 = vpop.f32.mrf.mxu0
        %v749 = vadd.f32 %v603, %v748
        %750 = vmatmul.f32.gmra.mxu0 %v639
        %v751 = vpop.f32.mrf.mxu0
        %v752 = vadd.f32 %v603, %v751
        %753 = vmatmul.f32.gmra.mxu0 %v642
        %v754 = vpop.f32.mrf.mxu0
        %v755 = vadd.f32 %v603, %v754
        %756 = vmatmul.f32.gmra.mxu0 %v645
        %v757 = vpop.f32.mrf.mxu0
        %v758 = vadd.f32 %v603, %v757
        %759 = vmatmul.f32.gmra.mxu0 %v648
        %v760 = vpop.f32.mrf.mxu0
        %v761 = vadd.f32 %v603, %v760
        %762 = vmatmul.f32.gmra.mxu0 %v651
        %v763 = vpop.f32.mrf.mxu0
        %v764 = vadd.f32 %v603, %v763
        %765 = vmatmul.f32.gmra.mxu0 %v654
        %v766 = vpop.f32.mrf.mxu0
        %v767 = vadd.f32 %v603, %v766
        %768 = vmatmul.f32.gmra.mxu0 %v657
        %v769 = vpop.f32.mrf.mxu0
        %v770 = vadd.f32 %v603, %v769
        %771 = vmatmul.f32.gmra.mxu0 %v660
        %v772 = vpop.f32.mrf.mxu0
        %v773 = vadd.f32 %v603, %v772
        %774 = vmatmul.f32.gmra.mxu0 %v663
        %v775 = vpop.f32.mrf.mxu0
        %v776 = vadd.f32 %v603, %v775
        %777 = vmatmul.f32.gmra.mxu0 %v666
        %v778 = vpop.f32.mrf.mxu0
        %v779 = vadd.f32 %v603, %v778
        %780 = vmatmul.f32.gmra.mxu0 %v669
        %v781 = vpop.f32.mrf.mxu0
        %v782 = vadd.f32 %v603, %v781
        %783 = vmatmul.f32.gmra.mxu0 %v672
        %v784 = vpop.f32.mrf.mxu0
        %v785 = vadd.f32 %v603, %v784
        %786 = vmatmul.f32.gmra.mxu0 %v675
        %v787 = vpop.f32.mrf.mxu0
        %v788 = vadd.f32 %v603, %v787
        %789 = vmatmul.f32.gmra.mxu0 %v678
        %v790 = vpop.f32.mrf.mxu0
        %v791 = vadd.f32 %v603, %v790
        %792 = vmatmul.f32.gmra.mxu0 %v681
        %v793 = vpop.f32.mrf.mxu0
        %v794 = vadd.f32 %v603, %v793
        %795 = vmatmul.f32.gmra.mxu0 %v684
        %v796 = vpop.f32.mrf.mxu0
        %v797 = vadd.f32 %v603, %v796
        %798 = vmatmul.f32.gmra.mxu0 %v687
        %v799 = vpop.f32.mrf.mxu0
        %v800 = vadd.f32 %v603, %v799
        %801 = vmatmul.f32.gmra.mxu0 %v690
        %v802 = vpop.f32.mrf.mxu0
        %v803 = vadd.f32 %v603, %v802
        %804 = vmatmul.f32.gmra.mxu0 %v693
        %v805 = vpop.f32.mrf.mxu0
        %v806 = vadd.f32 %v603, %v805
        %807 = vmatmul.f32.gmra.mxu0 %v696
        %v808 = vpop.f32.mrf.mxu0
        %v809 = vadd.f32 %v603, %v808
        %810 = vmatmul.f32.gmra.mxu0 %v699
        %v811 = vpop.f32.mrf.mxu0
        %v812 = vadd.f32 %v603, %v811
        %813 = vdwg.mxu0
        %v814 = vperm.slane %v597, 0
        %v815 = vmul.f32 %v719, %v814
        %v816 = vmul.f32 %v722, %v814
        %v817 = vmul.f32 %v725, %v814
        %v818 = vmul.f32 %v728, %v814
        %v819 = vmul.f32 %v731, %v814
        %v820 = vmul.f32 %v734, %v814
        %v821 = vmul.f32 %v737, %v814
        %v822 = vmul.f32 %v740, %v814
        %v823 = vmul.f32 %v743, %v814
        %v824 = vmul.f32 %v746, %v814
        %v825 = vmul.f32 %v749, %v814
        %v826 = vmul.f32 %v752, %v814
        %v827 = vmul.f32 %v755, %v814
        %v828 = vmul.f32 %v758, %v814
        %v829 = vmul.f32 %v761, %v814
        %v830 = vmul.f32 %v764, %v814
        %v831 = vmul.f32 %v767, %v814
        %v832 = vmul.f32 %v770, %v814
        %v833 = vmul.f32 %v773, %v814
        %v834 = vmul.f32 %v776, %v814
        %v835 = vmul.f32 %v779, %v814
        %v836 = vmul.f32 %v782, %v814
        %v837 = vmul.f32 %v785, %v814
        %v838 = vmul.f32 %v788, %v814
        %v839 = vmul.f32 %v791, %v814
        %v840 = vmul.f32 %v794, %v814
        %v841 = vmul.f32 %v797, %v814
        %v842 = vmul.f32 %v800, %v814
        %v843 = vmul.f32 %v803, %v814
        %v844 = vmul.f32 %v806, %v814
        %v845 = vmul.f32 %v809, %v814
        %v846 = vmul.f32 %v812, %v814
        %v847 = vld [vmem:[%s12] sm:$0xff]
        %v848 = vld [vmem:[%s12 + $0x8] sm:$0xff]
        %v850 = vsel %vm549, %v815, 0
        %v853 = vsel %vm549, %v816, 0
        %v856 = vsel %vm549, %v817, 0
        %v859 = vsel %vm549, %v818, 0
        %v862 = vsel %vm549, %v819, 0
        %v865 = vsel %vm549, %v820, 0
        %v868 = vsel %vm549, %v821, 0
        %v871 = vsel %vm549, %v822, 0
        %v874 = vsel %vm549, %v823, 0
        %v877 = vsel %vm549, %v824, 0
        %v880 = vsel %vm549, %v825, 0
        %v883 = vsel %vm549, %v826, 0
        %v886 = vsel %vm549, %v827, 0
        %v889 = vsel %vm549, %v828, 0
        %v892 = vsel %vm549, %v829, 0
        %v895 = vsel %vm549, %v830, 0
        %v898 = vsel %vm549, %v831, 0
        %v901 = vsel %vm549, %v832, 0
        %v904 = vsel %vm549, %v833, 0
        %v907 = vsel %vm549, %v834, 0
        %v910 = vsel %vm549, %v835, 0
        %v913 = vsel %vm549, %v836, 0
        %v916 = vsel %vm549, %v837, 0
        %v919 = vsel %vm549, %v838, 0
        %v922 = vsel %vm549, %v839, 0
        %v925 = vsel %vm549, %v840, 0
        %v928 = vsel %vm549, %v841, 0
        %v931 = vsel %vm549, %v842, 0
        %v934 = vsel %vm549, %v843, 0
        %v937 = vsel %vm549, %v844, 0
        %v940 = vsel %vm549, %v845, 0
        %v943 = vsel %vm549, %v846, 0
        %945 = vmatpush.msra.mxu0 0.0
        %946 = vmatpush.msra.mxu0 0.0
        %947 = vmatpush.msra.mxu0 0.0
        %948 = vmatpush.msra.mxu0 0.0
        %949 = vmatpush.msra.mxu0 0.0
        %950 = vmatpush.msra.mxu0 0.0
        %951 = vmatpush.msra.mxu0 0.0
        %952 = vmatpush.msra.mxu0 0.0
        %953 = vmatpush.msra.mxu0 0.0
        %954 = vmatpush.msra.mxu0 0.0
        %955 = vmatpush.msra.mxu0 0.0
        %956 = vmatpush.msra.mxu0 0.0
        %957 = vmatpush.msra.mxu0 0.0
        %958 = vmatpush.msra.mxu0 0.0
        %959 = vmatpush.msra.mxu0 %v848
        %960 = vmatpush.msra.mxu0 %v847
        %961 = vmatmul.f32.gmra.mxu0 %v850
        %v962 = vpop.f32.mrf.mxu0
        %v963 = vadd.f32 0.0, %v962
        %964 = vmatmul.f32.gmra.mxu0 %v853
        %v965 = vpop.f32.mrf.mxu0
        %v966 = vadd.f32 0.0, %v965
        %967 = vmatmul.f32.gmra.mxu0 %v856
        %v968 = vpop.f32.mrf.mxu0
        %v969 = vadd.f32 0.0, %v968
        %970 = vmatmul.f32.gmra.mxu0 %v859
        %v971 = vpop.f32.mrf.mxu0
        %v972 = vadd.f32 0.0, %v971
        %973 = vmatmul.f32.gmra.mxu0 %v862
        %v974 = vpop.f32.mrf.mxu0
        %v975 = vadd.f32 0.0, %v974
        %976 = vmatmul.f32.gmra.mxu0 %v865
        %v977 = vpop.f32.mrf.mxu0
        %v978 = vadd.f32 0.0, %v977
        %979 = vmatmul.f32.gmra.mxu0 %v868
        %v980 = vpop.f32.mrf.mxu0
        %v981 = vadd.f32 0.0, %v980
        %982 = vmatmul.f32.gmra.mxu0 %v871
        %v983 = vpop.f32.mrf.mxu0
        %v984 = vadd.f32 0.0, %v983
        %985 = vmatmul.f32.gmra.mxu0 %v874
        %v986 = vpop.f32.mrf.mxu0
        %v987 = vadd.f32 0.0, %v986
        %988 = vmatmul.f32.gmra.mxu0 %v877
        %v989 = vpop.f32.mrf.mxu0
        %v990 = vadd.f32 0.0, %v989
        %991 = vmatmul.f32.gmra.mxu0 %v880
        %v992 = vpop.f32.mrf.mxu0
        %v993 = vadd.f32 0.0, %v992
        %994 = vmatmul.f32.gmra.mxu0 %v883
        %v995 = vpop.f32.mrf.mxu0
        %v996 = vadd.f32 0.0, %v995
        %997 = vmatmul.f32.gmra.mxu0 %v886
        %v998 = vpop.f32.mrf.mxu0
        %v999 = vadd.f32 0.0, %v998
        %1000 = vmatmul.f32.gmra.mxu0 %v889
        %v1001 = vpop.f32.mrf.mxu0
        %v1002 = vadd.f32 0.0, %v1001
        %1003 = vmatmul.f32.gmra.mxu0 %v892
        %v1004 = vpop.f32.mrf.mxu0
        %v1005 = vadd.f32 0.0, %v1004
        %1006 = vmatmul.f32.gmra.mxu0 %v895
        %v1007 = vpop.f32.mrf.mxu0
        %v1008 = vadd.f32 0.0, %v1007
        %1009 = vmatmul.f32.gmra.mxu0 %v898
        %v1010 = vpop.f32.mrf.mxu0
        %v1011 = vadd.f32 0.0, %v1010
        %1012 = vmatmul.f32.gmra.mxu0 %v901
        %v1013 = vpop.f32.mrf.mxu0
        %v1014 = vadd.f32 0.0, %v1013
        %1015 = vmatmul.f32.gmra.mxu0 %v904
        %v1016 = vpop.f32.mrf.mxu0
        %v1017 = vadd.f32 0.0, %v1016
        %1018 = vmatmul.f32.gmra.mxu0 %v907
        %v1019 = vpop.f32.mrf.mxu0
        %v1020 = vadd.f32 0.0, %v1019
        %1021 = vmatmul.f32.gmra.mxu0 %v910
        %v1022 = vpop.f32.mrf.mxu0
        %v1023 = vadd.f32 0.0, %v1022
        %1024 = vmatmul.f32.gmra.mxu0 %v913
        %v1025 = vpop.f32.mrf.mxu0
        %v1026 = vadd.f32 0.0, %v1025
        %1027 = vmatmul.f32.gmra.mxu0 %v916
        %v1028 = vpop.f32.mrf.mxu0
        %v1029 = vadd.f32 0.0, %v1028
        %1030 = vmatmul.f32.gmra.mxu0 %v919
        %v1031 = vpop.f32.mrf.mxu0
        %v1032 = vadd.f32 0.0, %v1031
        %1033 = vmatmul.f32.gmra.mxu0 %v922
        %v1034 = vpop.f32.mrf.mxu0
        %v1035 = vadd.f32 0.0, %v1034
        %1036 = vmatmul.f32.gmra.mxu0 %v925
        %v1037 = vpop.f32.mrf.mxu0
        %v1038 = vadd.f32 0.0, %v1037
        %1039 = vmatmul.f32.gmra.mxu0 %v928
        %v1040 = vpop.f32.mrf.mxu0
        %v1041 = vadd.f32 0.0, %v1040
        %1042 = vmatmul.f32.gmra.mxu0 %v931
        %v1043 = vpop.f32.mrf.mxu0
        %v1044 = vadd.f32 0.0, %v1043
        %1045 = vmatmul.f32.gmra.mxu0 %v934
        %v1046 = vpop.f32.mrf.mxu0
        %v1047 = vadd.f32 0.0, %v1046
        %1048 = vmatmul.f32.gmra.mxu0 %v937
        %v1049 = vpop.f32.mrf.mxu0
        %v1050 = vadd.f32 0.0, %v1049
        %1051 = vmatmul.f32.gmra.mxu0 %v940
        %v1052 = vpop.f32.mrf.mxu0
        %v1053 = vadd.f32 0.0, %v1052
        %1054 = vmatmul.f32.gmra.mxu0 %v943
        %v1055 = vpop.f32.mrf.mxu0
        %v1056 = vadd.f32 0.0, %v1055
        %1057 = vdwg.mxu0
        %v1058 = vmul.f32 %v963, 0.70710677
        %v1059 = vmul.f32 %v966, 0.70710677
        %v1060 = vmul.f32 %v969, 0.70710677
        %v1061 = vmul.f32 %v972, 0.70710677
        %v1062 = vmul.f32 %v975, 0.70710677
        %v1063 = vmul.f32 %v978, 0.70710677
        %v1064 = vmul.f32 %v981, 0.70710677
        %v1065 = vmul.f32 %v984, 0.70710677
        %v1066 = vmul.f32 %v987, 0.70710677
        %v1067 = vmul.f32 %v990, 0.70710677
        %v1068 = vmul.f32 %v993, 0.70710677
        %v1069 = vmul.f32 %v996, 0.70710677
        %v1070 = vmul.f32 %v999, 0.70710677
        %v1071 = vmul.f32 %v1002, 0.70710677
        %v1072 = vmul.f32 %v1005, 0.70710677
        %v1073 = vmul.f32 %v1008, 0.70710677
        %v1074 = vmul.f32 %v1011, 0.70710677
        %v1075 = vmul.f32 %v1014, 0.70710677
        %v1076 = vmul.f32 %v1017, 0.70710677
        %v1077 = vmul.f32 %v1020, 0.70710677
        %v1078 = vmul.f32 %v1023, 0.70710677
        %v1079 = vmul.f32 %v1026, 0.70710677
        %v1080 = vmul.f32 %v1029, 0.70710677
        %v1081 = vmul.f32 %v1032, 0.70710677
        %v1082 = vmul.f32 %v1035, 0.70710677
        %v1083 = vmul.f32 %v1038, 0.70710677
        %v1084 = vmul.f32 %v1041, 0.70710677
        %v1085 = vmul.f32 %v1044, 0.70710677
        %v1086 = vmul.f32 %v1047, 0.70710677
        %v1087 = vmul.f32 %v1050, 0.70710677
        %v1088 = vmul.f32 %v1053, 0.70710677
        %v1089 = vmul.f32 %v1056, 0.70710677
        %vm1090 = vcmask 64512
        %v1091 = vsel %vm1090, %v1058, -inf
        %v1092 = vsel %vm1090, %v1059, -inf
        %v1093 = vsel %vm1090, %v1060, -inf
        %v1094 = vsel %vm1090, %v1061, -inf
        %v1095 = vsel %vm1090, %v1062, -inf
        %v1096 = vmax.f32 %v1091, %v1095
        %v1097 = vsel %vm1090, %v1063, -inf
        %v1098 = vmax.f32 %v1092, %v1097
        %v1099 = vsel %vm1090, %v1064, -inf
        %v1100 = vmax.f32 %v1093, %v1099
        %v1101 = vsel %vm1090, %v1065, -inf
        %v1102 = vmax.f32 %v1094, %v1101
        %v1103 = vsel %vm1090, %v1066, -inf
        %v1104 = vmax.f32 %v1096, %v1103
        %v1105 = vsel %vm1090, %v1067, -inf
        %v1106 = vmax.f32 %v1098, %v1105
        %v1107 = vsel %vm1090, %v1068, -inf
        %v1108 = vmax.f32 %v1100, %v1107
        %v1109 = vsel %vm1090, %v1069, -inf
        %v1110 = vmax.f32 %v1102, %v1109
        %v1111 = vsel %vm1090, %v1070, -inf
        %v1112 = vmax.f32 %v1104, %v1111
        %v1113 = vsel %vm1090, %v1071, -inf
        %v1114 = vmax.f32 %v1106, %v1113
        %v1115 = vsel %vm1090, %v1072, -inf
        %v1116 = vmax.f32 %v1108, %v1115
        %v1117 = vsel %vm1090, %v1073, -inf
        %v1118 = vmax.f32 %v1110, %v1117
        %v1119 = vsel %vm1090, %v1074, -inf
        %v1120 = vmax.f32 %v1112, %v1119
        %v1121 = vsel %vm1090, %v1075, -inf
        %v1122 = vmax.f32 %v1114, %v1121
        %v1123 = vsel %vm1090, %v1076, -inf
        %v1124 = vmax.f32 %v1116, %v1123
        %v1125 = vsel %vm1090, %v1077, -inf
        %v1126 = vmax.f32 %v1118, %v1125
        %v1127 = vsel %vm1090, %v1078, -inf
        %v1128 = vmax.f32 %v1120, %v1127
        %v1129 = vsel %vm1090, %v1079, -inf
        %v1130 = vmax.f32 %v1122, %v1129
        %v1131 = vsel %vm1090, %v1080, -inf
        %v1132 = vmax.f32 %v1124, %v1131
        %v1133 = vsel %vm1090, %v1081, -inf
        %v1134 = vmax.f32 %v1126, %v1133
        %v1135 = vsel %vm1090, %v1082, -inf
        %v1136 = vmax.f32 %v1128, %v1135
        %v1137 = vsel %vm1090, %v1083, -inf
        %v1138 = vmax.f32 %v1130, %v1137
        %v1139 = vsel %vm1090, %v1084, -inf
        %v1140 = vmax.f32 %v1132, %v1139
        %v1141 = vsel %vm1090, %v1085, -inf
        %v1142 = vmax.f32 %v1134, %v1141
        %v1143 = vsel %vm1090, %v1086, -inf
        %v1144 = vmax.f32 %v1136, %v1143
        %v1145 = vsel %vm1090, %v1087, -inf
        %v1146 = vmax.f32 %v1138, %v1145
        %v1147 = vsel %vm1090, %v1088, -inf
        %v1148 = vmax.f32 %v1140, %v1147
        %v1149 = vsel %vm1090, %v1089, -inf
        %v1150 = vmax.f32 %v1142, %v1149
        %v1151 = vmax.f32 %v1144, %v1146
        %v1152 = vmax.f32 %v1148, %v1150
        %v1153 = vmax.f32 %v1151, %v1152
        %v1154 = vrot.slane %v1153, 4
        %v1155 = vmax.f32 %v1153, %v1154
        %v1156 = vrot.slane %v1155, 2
        %v1157 = vmax.f32 %v1155, %v1156
        %v1158 = vrot.slane %v1157, 1
        %v1159 = vmax.f32 %v1157, %v1158
        %v1160 = vsub.f32 %v1058, %v1159
        %v1161 = vsub.f32 %v1059, %v1159
        %v1162 = vsub.f32 %v1060, %v1159
        %v1163 = vsub.f32 %v1061, %v1159
        %v1164 = vsub.f32 %v1062, %v1159
        %v1165 = vsub.f32 %v1063, %v1159
        %v1166 = vsub.f32 %v1064, %v1159
        %v1167 = vsub.f32 %v1065, %v1159
        %v1168 = vsub.f32 %v1066, %v1159
        %v1169 = vsub.f32 %v1067, %v1159
        %v1170 = vsub.f32 %v1068, %v1159
        %v1171 = vsub.f32 %v1069, %v1159
        %v1172 = vsub.f32 %v1070, %v1159
        %v1173 = vsub.f32 %v1071, %v1159
        %v1174 = vsub.f32 %v1072, %v1159
        %v1175 = vsub.f32 %v1073, %v1159
        %v1176 = vsub.f32 %v1074, %v1159
        %v1177 = vsub.f32 %v1075, %v1159
        %v1178 = vsub.f32 %v1076, %v1159
        %v1179 = vsub.f32 %v1077, %v1159
        %v1180 = vsub.f32 %v1078, %v1159
        %v1181 = vsub.f32 %v1079, %v1159
        %v1182 = vsub.f32 %v1080, %v1159
        %v1183 = vsub.f32 %v1081, %v1159
        %v1184 = vsub.f32 %v1082, %v1159
        %v1185 = vsub.f32 %v1083, %v1159
        %v1186 = vsub.f32 %v1084, %v1159
        %v1187 = vsub.f32 %v1085, %v1159
        %v1188 = vsub.f32 %v1086, %v1159
        %v1189 = vsub.f32 %v1087, %v1159
        %v1190 = vsub.f32 %v1088, %v1159
        %v1191 = vsub.f32 %v1089, %v1159
        %v1192 = vmul.f32 %v1160, 1.442695
        %v1193 = vpow.pop %v1192
        %v1194 = vmul.f32 %v1161, 1.442695
        %v1195 = vpow.pop %v1194
        %v1196 = vmul.f32 %v1162, 1.442695
        %v1197 = vpow.pop %v1196
        %v1198 = vmul.f32 %v1163, 1.442695
        %v1199 = vpow.pop %v1198
        %v1200 = vmul.f32 %v1164, 1.442695
        %v1201 = vpow.pop %v1200
        %v1202 = vmul.f32 %v1165, 1.442695
        %v1203 = vpow.pop %v1202
        %v1204 = vmul.f32 %v1166, 1.442695
        %v1205 = vpow.pop %v1204
        %v1206 = vmul.f32 %v1167, 1.442695
        %v1207 = vpow.pop %v1206
        %v1208 = vmul.f32 %v1168, 1.442695
        %v1209 = vpow.pop %v1208
        %v1210 = vmul.f32 %v1169, 1.442695
        %v1211 = vpow.pop %v1210
        %v1212 = vmul.f32 %v1170, 1.442695
        %v1213 = vpow.pop %v1212
        %v1214 = vmul.f32 %v1171, 1.442695
        %v1215 = vpow.pop %v1214
        %v1216 = vmul.f32 %v1172, 1.442695
        %v1217 = vpow.pop %v1216
        %v1218 = vmul.f32 %v1173, 1.442695
        %v1219 = vpow.pop %v1218
        %v1220 = vmul.f32 %v1174, 1.442695
        %v1221 = vpow.pop %v1220
        %v1222 = vmul.f32 %v1175, 1.442695
        %v1223 = vpow.pop %v1222
        %v1224 = vmul.f32 %v1176, 1.442695
        %v1225 = vpow.pop %v1224
        %v1226 = vmul.f32 %v1177, 1.442695
        %v1227 = vpow.pop %v1226
        %v1228 = vmul.f32 %v1178, 1.442695
        %v1229 = vpow.pop %v1228
        %v1230 = vmul.f32 %v1179, 1.442695
        %v1231 = vpow.pop %v1230
        %v1232 = vmul.f32 %v1180, 1.442695
        %v1233 = vpow.pop %v1232
        %v1234 = vmul.f32 %v1181, 1.442695
        %v1235 = vpow.pop %v1234
        %v1236 = vmul.f32 %v1182, 1.442695
        %v1237 = vpow.pop %v1236
        %v1238 = vmul.f32 %v1183, 1.442695
        %v1239 = vpow.pop %v1238
        %v1240 = vmul.f32 %v1184, 1.442695
        %v1241 = vpow.pop %v1240
        %v1242 = vmul.f32 %v1185, 1.442695
        %v1243 = vpow.pop %v1242
        %v1244 = vmul.f32 %v1186, 1.442695
        %v1245 = vpow.pop %v1244
        %v1246 = vmul.f32 %v1187, 1.442695
        %v1247 = vpow.pop %v1246
        %v1248 = vmul.f32 %v1188, 1.442695
        %v1249 = vpow.pop %v1248
        %v1250 = vmul.f32 %v1189, 1.442695
        %v1251 = vpow.pop %v1250
        %v1252 = vmul.f32 %v1190, 1.442695
        %v1253 = vpow.pop %v1252
        %v1254 = vmul.f32 %v1191, 1.442695
        %v1255 = vpow.pop %v1254
        %v1256 = vsel %vm1090, %v1193, 0.0
        %v1257 = vsel %vm1090, %v1195, 0.0
        %v1258 = vadd.f32 %v1256, %v1257
        %v1259 = vsel %vm1090, %v1197, 0.0
        %v1260 = vadd.f32 %v1258, %v1259
        %v1261 = vsel %vm1090, %v1199, 0.0
        %v1262 = vadd.f32 %v1260, %v1261
        %v1263 = vsel %vm1090, %v1201, 0.0
        %v1264 = vadd.f32 %v1262, %v1263
        %v1265 = vsel %vm1090, %v1203, 0.0
        %v1266 = vadd.f32 %v1264, %v1265
        %v1267 = vsel %vm1090, %v1205, 0.0
        %v1268 = vadd.f32 %v1266, %v1267
        %v1269 = vsel %vm1090, %v1207, 0.0
        %v1270 = vadd.f32 %v1268, %v1269
        %v1271 = vsel %vm1090, %v1209, 0.0
        %v1272 = vadd.f32 %v1270, %v1271
        %v1273 = vsel %vm1090, %v1211, 0.0
        %v1274 = vadd.f32 %v1272, %v1273
        %v1275 = vsel %vm1090, %v1213, 0.0
        %v1276 = vadd.f32 %v1274, %v1275
        %v1277 = vsel %vm1090, %v1215, 0.0
        %v1278 = vadd.f32 %v1276, %v1277
        %v1279 = vsel %vm1090, %v1217, 0.0
        %v1280 = vadd.f32 %v1278, %v1279
        %v1281 = vsel %vm1090, %v1219, 0.0
        %v1282 = vadd.f32 %v1280, %v1281
        %v1283 = vsel %vm1090, %v1221, 0.0
        %v1284 = vadd.f32 %v1282, %v1283
        %v1285 = vsel %vm1090, %v1223, 0.0
        %v1286 = vadd.f32 %v1284, %v1285
        %v1287 = vsel %vm1090, %v1225, 0.0
        %v1288 = vadd.f32 %v1286, %v1287
        %v1289 = vsel %vm1090, %v1227, 0.0
        %v1290 = vadd.f32 %v1288, %v1289
        %v1291 = vsel %vm1090, %v1229, 0.0
        %v1292 = vadd.f32 %v1290, %v1291
        %v1293 = vsel %vm1090, %v1231, 0.0
        %v1294 = vadd.f32 %v1292, %v1293
        %v1295 = vsel %vm1090, %v1233, 0.0
        %v1296 = vadd.f32 %v1294, %v1295
        %v1297 = vsel %vm1090, %v1235, 0.0
        %v1298 = vadd.f32 %v1296, %v1297
        %v1299 = vsel %vm1090, %v1237, 0.0
        %v1300 = vadd.f32 %v1298, %v1299
        %v1301 = vsel %vm1090, %v1239, 0.0
        %v1302 = vadd.f32 %v1300, %v1301
        %v1303 = vsel %vm1090, %v1241, 0.0
        %v1304 = vadd.f32 %v1302, %v1303
        %v1305 = vsel %vm1090, %v1243, 0.0
        %v1306 = vadd.f32 %v1304, %v1305
        %v1307 = vsel %vm1090, %v1245, 0.0
        %v1308 = vadd.f32 %v1306, %v1307
        %v1309 = vsel %vm1090, %v1247, 0.0
        %v1310 = vadd.f32 %v1308, %v1309
        %v1311 = vsel %vm1090, %v1249, 0.0
        %v1312 = vadd.f32 %v1310, %v1311
        %v1313 = vsel %vm1090, %v1251, 0.0
        %v1314 = vadd.f32 %v1312, %v1313
        %v1315 = vsel %vm1090, %v1253, 0.0
        %v1316 = vadd.f32 %v1314, %v1315
        %v1317 = vsel %vm1090, %v1255, 0.0
        %v1318 = vadd.f32 %v1316, %v1317
        %v1319 = vrot.slane %v1318, 4
        %v1320 = vadd.f32 %v1318, %v1319
        %v1321 = vrot.slane %v1320, 2
        %v1322 = vadd.f32 %v1320, %v1321
        %v1323 = vrot.slane %v1322, 1
        %v1324 = vadd.f32 %v1322, %v1323
        %v1325 = vrcp.pop %v1324
        %v1326 = vmul.f32 %v1193, %v1325
        %v1327 = vmul.f32 %v1195, %v1325
        %v1328 = vmul.f32 %v1197, %v1325
        %v1329 = vmul.f32 %v1199, %v1325
        %v1330 = vmul.f32 %v1201, %v1325
        %v1331 = vmul.f32 %v1203, %v1325
        %v1332 = vmul.f32 %v1205, %v1325
        %v1333 = vmul.f32 %v1207, %v1325
        %v1334 = vmul.f32 %v1209, %v1325
        %v1335 = vmul.f32 %v1211, %v1325
        %v1336 = vmul.f32 %v1213, %v1325
        %v1337 = vmul.f32 %v1215, %v1325
        %v1338 = vmul.f32 %v1217, %v1325
        %v1339 = vmul.f32 %v1219, %v1325
        %v1340 = vmul.f32 %v1221, %v1325
        %v1341 = vmul.f32 %v1223, %v1325
        %v1342 = vmul.f32 %v1225, %v1325
        %v1343 = vmul.f32 %v1227, %v1325
        %v1344 = vmul.f32 %v1229, %v1325
        %v1345 = vmul.f32 %v1231, %v1325
        %v1346 = vmul.f32 %v1233, %v1325
        %v1347 = vmul.f32 %v1235, %v1325
        %v1348 = vmul.f32 %v1237, %v1325
        %v1349 = vmul.f32 %v1239, %v1325
        %v1350 = vmul.f32 %v1241, %v1325
        %v1351 = vmul.f32 %v1243, %v1325
        %v1352 = vmul.f32 %v1245, %v1325
        %v1353 = vmul.f32 %v1247, %v1325
        %v1354 = vmul.f32 %v1249, %v1325
        %v1355 = vmul.f32 %v1251, %v1325
        %v1356 = vmul.f32 %v1253, %v1325
        %v1357 = vmul.f32 %v1255, %v1325
        %v1358 = vld [vmem:[%s13] sm:$0xff]
        %v1360 = vsel %vm1090, %v1326, 0
        %v1363 = vsel %vm1090, %v1327, 0
        %v1366 = vsel %vm1090, %v1328, 0
        %v1369 = vsel %vm1090, %v1329, 0
        %v1372 = vsel %vm1090, %v1330, 0
        %v1375 = vsel %vm1090, %v1331, 0
        %v1378 = vsel %vm1090, %v1332, 0
        %v1381 = vsel %vm1090, %v1333, 0
        %v1384 = vsel %vm1090, %v1334, 0
        %v1387 = vsel %vm1090, %v1335, 0
        %v1390 = vsel %vm1090, %v1336, 0
        %v1393 = vsel %vm1090, %v1337, 0
        %v1396 = vsel %vm1090, %v1338, 0
        %v1399 = vsel %vm1090, %v1339, 0
        %v1402 = vsel %vm1090, %v1340, 0
        %v1405 = vsel %vm1090, %v1341, 0
        %v1408 = vsel %vm1090, %v1342, 0
        %v1411 = vsel %vm1090, %v1343, 0
        %v1414 = vsel %vm1090, %v1344, 0
        %v1417 = vsel %vm1090, %v1345, 0
        %v1420 = vsel %vm1090, %v1346, 0
        %v1423 = vsel %vm1090, %v1347, 0
        %v1426 = vsel %vm1090, %v1348, 0
        %v1429 = vsel %vm1090, %v1349, 0
        %v1432 = vsel %vm1090, %v1350, 0
        %v1435 = vsel %vm1090, %v1351, 0
        %v1438 = vsel %vm1090, %v1352, 0
        %v1441 = vsel %vm1090, %v1353, 0
        %v1444 = vsel %vm1090, %v1354, 0
        %v1447 = vsel %vm1090, %v1355, 0
        %v1450 = vsel %vm1090, %v1356, 0
        %v1453 = vsel %vm1090, %v1357, 0
        %1455 = vmatpush.msra.mxu0 0.0
        %1456 = vmatpush.msra.mxu0 0.0
        %1457 = vmatpush.msra.mxu0 0.0
        %1458 = vmatpush.msra.mxu0 0.0
        %1459 = vmatpush.msra.mxu0 0.0
        %1460 = vmatpush.msra.mxu0 0.0
        %1461 = vmatpush.msra.mxu0 0.0
        %1462 = vmatpush.msra.mxu0 0.0
        %1463 = vmatpush.msra.mxu0 0.0
        %1464 = vmatpush.msra.mxu0 0.0
        %1465 = vmatpush.msra.mxu0 0.0
        %1466 = vmatpush.msra.mxu0 0.0
        %1467 = vmatpush.msra.mxu0 0.0
        %1468 = vmatpush.msra.mxu0 0.0
        %1469 = vmatpush.msra.mxu0 0.0
        %1470 = vmatpush.msra.mxu0 %v1358
        %1471 = vmatmul.f32.gmra.mxu0 %v1360
        %v1472 = vpop.f32.mrf.mxu0
        %v1473 = vadd.f32 0.0, %v1472
        %1474 = vmatmul.f32.gmra.mxu0 %v1363
        %v1475 = vpop.f32.mrf.mxu0
        %v1476 = vadd.f32 0.0, %v1475
        %1477 = vmatmul.f32.gmra.mxu0 %v1366
        %v1478 = vpop.f32.mrf.mxu0
        %v1479 = vadd.f32 0.0, %v1478
        %1480 = vmatmul.f32.gmra.mxu0 %v1369
        %v1481 = vpop.f32.mrf.mxu0
        %v1482 = vadd.f32 0.0, %v1481
        %1483 = vmatmul.f32.gmra.mxu0 %v1372
        %v1484 = vpop.f32.mrf.mxu0
        %v1485 = vadd.f32 0.0, %v1484
        %1486 = vmatmul.f32.gmra.mxu0 %v1375
        %v1487 = vpop.f32.mrf.mxu0
        %v1488 = vadd.f32 0.0, %v1487
        %1489 = vmatmul.f32.gmra.mxu0 %v1378
        %v1490 = vpop.f32.mrf.mxu0
        %v1491 = vadd.f32 0.0, %v1490
        %1492 = vmatmul.f32.gmra.mxu0 %v1381
        %v1493 = vpop.f32.mrf.mxu0
        %v1494 = vadd.f32 0.0, %v1493
        %1495 = vmatmul.f32.gmra.mxu0 %v1384
        %v1496 = vpop.f32.mrf.mxu0
        %v1497 = vadd.f32 0.0, %v1496
        %1498 = vmatmul.f32.gmra.mxu0 %v1387
        %v1499 = vpop.f32.mrf.mxu0
        %v1500 = vadd.f32 0.0, %v1499
        %1501 = vmatmul.f32.gmra.mxu0 %v1390
        %v1502 = vpop.f32.mrf.mxu0
        %v1503 = vadd.f32 0.0, %v1502
        %1504 = vmatmul.f32.gmra.mxu0 %v1393
        %v1505 = vpop.f32.mrf.mxu0
        %v1506 = vadd.f32 0.0, %v1505
        %1507 = vmatmul.f32.gmra.mxu0 %v1396
        %v1508 = vpop.f32.mrf.mxu0
        %v1509 = vadd.f32 0.0, %v1508
        %1510 = vmatmul.f32.gmra.mxu0 %v1399
        %v1511 = vpop.f32.mrf.mxu0
        %v1512 = vadd.f32 0.0, %v1511
        %1513 = vmatmul.f32.gmra.mxu0 %v1402
        %v1514 = vpop.f32.mrf.mxu0
        %v1515 = vadd.f32 0.0, %v1514
        %1516 = vmatmul.f32.gmra.mxu0 %v1405
        %v1517 = vpop.f32.mrf.mxu0
        %v1518 = vadd.f32 0.0, %v1517
        %1519 = vmatmul.f32.gmra.mxu0 %v1408
        %v1520 = vpop.f32.mrf.mxu0
        %v1521 = vadd.f32 0.0, %v1520
        %1522 = vmatmul.f32.gmra.mxu0 %v1411
        %v1523 = vpop.f32.mrf.mxu0
        %v1524 = vadd.f32 0.0, %v1523
        %1525 = vmatmul.f32.gmra.mxu0 %v1414
        %v1526 = vpop.f32.mrf.mxu0
        %v1527 = vadd.f32 0.0, %v1526
        %1528 = vmatmul.f32.gmra.mxu0 %v1417
        %v1529 = vpop.f32.mrf.mxu0
        %v1530 = vadd.f32 0.0, %v1529
        %1531 = vmatmul.f32.gmra.mxu0 %v1420
        %v1532 = vpop.f32.mrf.mxu0
        %v1533 = vadd.f32 0.0, %v1532
        %1534 = vmatmul.f32.gmra.mxu0 %v1423
        %v1535 = vpop.f32.mrf.mxu0
        %v1536 = vadd.f32 0.0, %v1535
        %1537 = vmatmul.f32.gmra.mxu0 %v1426
        %v1538 = vpop.f32.mrf.mxu0
        %v1539 = vadd.f32 0.0, %v1538
        %1540 = vmatmul.f32.gmra.mxu0 %v1429
        %v1541 = vpop.f32.mrf.mxu0
        %v1542 = vadd.f32 0.0, %v1541
        %1543 = vmatmul.f32.gmra.mxu0 %v1432
        %v1544 = vpop.f32.mrf.mxu0
        %v1545 = vadd.f32 0.0, %v1544
        %1546 = vmatmul.f32.gmra.mxu0 %v1435
        %v1547 = vpop.f32.mrf.mxu0
        %v1548 = vadd.f32 0.0, %v1547
        %1549 = vmatmul.f32.gmra.mxu0 %v1438
        %v1550 = vpop.f32.mrf.mxu0
        %v1551 = vadd.f32 0.0, %v1550
        %1552 = vmatmul.f32.gmra.mxu0 %v1441
        %v1553 = vpop.f32.mrf.mxu0
        %v1554 = vadd.f32 0.0, %v1553
        %1555 = vmatmul.f32.gmra.mxu0 %v1444
        %v1556 = vpop.f32.mrf.mxu0
        %v1557 = vadd.f32 0.0, %v1556
        %1558 = vmatmul.f32.gmra.mxu0 %v1447
        %v1559 = vpop.f32.mrf.mxu0
        %v1560 = vadd.f32 0.0, %v1559
        %1561 = vmatmul.f32.gmra.mxu0 %v1450
        %v1562 = vpop.f32.mrf.mxu0
        %v1563 = vadd.f32 0.0, %v1562
        %1564 = vmatmul.f32.gmra.mxu0 %v1453
        %v1565 = vpop.f32.mrf.mxu0
        %v1566 = vadd.f32 0.0, %v1565
        %1567 = vdwg.mxu0
        %1600 = vrot.lane.b32.xlu0 %v719, 112
        %v1601 = vpop.permute.xlu0 %1600
        %1602 = vrot.lane.b32.xlu0 %v722, 112
        %v1603 = vpop.permute.xlu0 %1602
        %1604 = vrot.lane.b32.xlu0 %v725, 112
        %v1605 = vpop.permute.xlu0 %1604
        %1606 = vrot.lane.b32.xlu0 %v728, 112
        %v1607 = vpop.permute.xlu0 %1606
        %1608 = vrot.lane.b32.xlu0 %v731, 112
        %v1609 = vpop.permute.xlu0 %1608
        %1610 = vrot.lane.b32.xlu0 %v734, 112
        %v1611 = vpop.permute.xlu0 %1610
        %1612 = vrot.lane.b32.xlu0 %v737, 112
        %v1613 = vpop.permute.xlu0 %1612
        %1614 = vrot.lane.b32.xlu0 %v740, 112
        %v1615 = vpop.permute.xlu0 %1614
        %1616 = vrot.lane.b32.xlu0 %v743, 112
        %v1617 = vpop.permute.xlu0 %1616
        %1618 = vrot.lane.b32.xlu0 %v746, 112
        %v1619 = vpop.permute.xlu0 %1618
        %1620 = vrot.lane.b32.xlu0 %v749, 112
        %v1621 = vpop.permute.xlu0 %1620
        %1622 = vrot.lane.b32.xlu0 %v752, 112
        %v1623 = vpop.permute.xlu0 %1622
        %1624 = vrot.lane.b32.xlu0 %v755, 112
        %v1625 = vpop.permute.xlu0 %1624
        %1626 = vrot.lane.b32.xlu0 %v758, 112
        %v1627 = vpop.permute.xlu0 %1626
        %1628 = vrot.lane.b32.xlu0 %v761, 112
        %v1629 = vpop.permute.xlu0 %1628
        %1630 = vrot.lane.b32.xlu0 %v764, 112
        %v1631 = vpop.permute.xlu0 %1630
        %1632 = vrot.lane.b32.xlu0 %v767, 112
        %v1633 = vpop.permute.xlu0 %1632
        %1634 = vrot.lane.b32.xlu0 %v770, 112
        %v1635 = vpop.permute.xlu0 %1634
        %1636 = vrot.lane.b32.xlu0 %v773, 112
        %v1637 = vpop.permute.xlu0 %1636
        %1638 = vrot.lane.b32.xlu0 %v776, 112
        %v1639 = vpop.permute.xlu0 %1638
        %1640 = vrot.lane.b32.xlu0 %v779, 112
        %v1641 = vpop.permute.xlu0 %1640
        %1642 = vrot.lane.b32.xlu0 %v782, 112
        %v1643 = vpop.permute.xlu0 %1642
        %1644 = vrot.lane.b32.xlu0 %v785, 112
        %v1645 = vpop.permute.xlu0 %1644
        %1646 = vrot.lane.b32.xlu0 %v788, 112
        %v1647 = vpop.permute.xlu0 %1646
        %1648 = vrot.lane.b32.xlu0 %v791, 112
        %v1649 = vpop.permute.xlu0 %1648
        %1650 = vrot.lane.b32.xlu0 %v794, 112
        %v1651 = vpop.permute.xlu0 %1650
        %1652 = vrot.lane.b32.xlu0 %v797, 112
        %v1653 = vpop.permute.xlu0 %1652
        %1654 = vrot.lane.b32.xlu0 %v800, 112
        %v1655 = vpop.permute.xlu0 %1654
        %1656 = vrot.lane.b32.xlu0 %v803, 112
        %v1657 = vpop.permute.xlu0 %1656
        %1658 = vrot.lane.b32.xlu0 %v806, 112
        %v1659 = vpop.permute.xlu0 %1658
        %1660 = vrot.lane.b32.xlu0 %v809, 112
        %v1661 = vpop.permute.xlu0 %1660
        %1662 = vrot.lane.b32.xlu0 %v812, 112
        %v1663 = vpop.permute.xlu0 %1662
        %v1696 = vmul.f32 %v1473, %v1601
        %v1697 = vmul.f32 %v1476, %v1603
        %v1698 = vmul.f32 %v1479, %v1605
        %v1699 = vmul.f32 %v1482, %v1607
        %v1700 = vmul.f32 %v1485, %v1609
        %v1701 = vmul.f32 %v1488, %v1611
        %v1702 = vmul.f32 %v1491, %v1613
        %v1703 = vmul.f32 %v1494, %v1615
        %v1704 = vmul.f32 %v1497, %v1617
        %v1705 = vmul.f32 %v1500, %v1619
        %v1706 = vmul.f32 %v1503, %v1621
        %v1707 = vmul.f32 %v1506, %v1623
        %v1708 = vmul.f32 %v1509, %v1625
        %v1709 = vmul.f32 %v1512, %v1627
        %v1710 = vmul.f32 %v1515, %v1629
        %v1711 = vmul.f32 %v1518, %v1631
        %v1712 = vmul.f32 %v1521, %v1633
        %v1713 = vmul.f32 %v1524, %v1635
        %v1714 = vmul.f32 %v1527, %v1637
        %v1715 = vmul.f32 %v1530, %v1639
        %v1716 = vmul.f32 %v1533, %v1641
        %v1717 = vmul.f32 %v1536, %v1643
        %v1718 = vmul.f32 %v1539, %v1645
        %v1719 = vmul.f32 %v1542, %v1647
        %v1720 = vmul.f32 %v1545, %v1649
        %v1721 = vmul.f32 %v1548, %v1651
        %v1722 = vmul.f32 %v1551, %v1653
        %v1723 = vmul.f32 %v1554, %v1655
        %v1724 = vmul.f32 %v1557, %v1657
        %v1725 = vmul.f32 %v1560, %v1659
        %v1726 = vmul.f32 %v1563, %v1661
        %v1727 = vmul.f32 %v1566, %v1663
        %v1728 = vsel %vm549, %v1696, 0.0
        %v1729 = vsel %vm549, %v1697, 0.0
        %v1730 = vadd.f32 %v1728, %v1729
        %v1731 = vsel %vm549, %v1698, 0.0
        %v1732 = vadd.f32 %v1730, %v1731
        %v1733 = vsel %vm549, %v1699, 0.0
        %v1734 = vadd.f32 %v1732, %v1733
        %v1735 = vsel %vm549, %v1700, 0.0
        %v1736 = vadd.f32 %v1734, %v1735
        %v1737 = vsel %vm549, %v1701, 0.0
        %v1738 = vadd.f32 %v1736, %v1737
        %v1739 = vsel %vm549, %v1702, 0.0
        %v1740 = vadd.f32 %v1738, %v1739
        %v1741 = vsel %vm549, %v1703, 0.0
        %v1742 = vadd.f32 %v1740, %v1741
        %v1743 = vsel %vm549, %v1704, 0.0
        %v1744 = vadd.f32 %v1742, %v1743
        %v1745 = vsel %vm549, %v1705, 0.0
        %v1746 = vadd.f32 %v1744, %v1745
        %v1747 = vsel %vm549, %v1706, 0.0
        %v1748 = vadd.f32 %v1746, %v1747
        %v1749 = vsel %vm549, %v1707, 0.0
        %v1750 = vadd.f32 %v1748, %v1749
        %v1751 = vsel %vm549, %v1708, 0.0
        %v1752 = vadd.f32 %v1750, %v1751
        %v1753 = vsel %vm549, %v1709, 0.0
        %v1754 = vadd.f32 %v1752, %v1753
        %v1755 = vsel %vm549, %v1710, 0.0
        %v1756 = vadd.f32 %v1754, %v1755
        %v1757 = vsel %vm549, %v1711, 0.0
        %v1758 = vadd.f32 %v1756, %v1757
        %v1759 = vsel %vm549, %v1712, 0.0
        %v1760 = vadd.f32 %v1758, %v1759
        %v1761 = vsel %vm549, %v1713, 0.0
        %v1762 = vadd.f32 %v1760, %v1761
        %v1763 = vsel %vm549, %v1714, 0.0
        %v1764 = vadd.f32 %v1762, %v1763
        %v1765 = vsel %vm549, %v1715, 0.0
        %v1766 = vadd.f32 %v1764, %v1765
        %v1767 = vsel %vm549, %v1716, 0.0
        %v1768 = vadd.f32 %v1766, %v1767
        %v1769 = vsel %vm549, %v1717, 0.0
        %v1770 = vadd.f32 %v1768, %v1769
        %v1771 = vsel %vm549, %v1718, 0.0
        %v1772 = vadd.f32 %v1770, %v1771
        %v1773 = vsel %vm549, %v1719, 0.0
        %v1774 = vadd.f32 %v1772, %v1773
        %v1775 = vsel %vm549, %v1720, 0.0
        %v1776 = vadd.f32 %v1774, %v1775
        %v1777 = vsel %vm549, %v1721, 0.0
        %v1778 = vadd.f32 %v1776, %v1777
        %v1779 = vsel %vm549, %v1722, 0.0
        %v1780 = vadd.f32 %v1778, %v1779
        %v1781 = vsel %vm549, %v1723, 0.0
        %v1782 = vadd.f32 %v1780, %v1781
        %v1783 = vsel %vm549, %v1724, 0.0
        %v1784 = vadd.f32 %v1782, %v1783
        %v1785 = vsel %vm549, %v1725, 0.0
        %v1786 = vadd.f32 %v1784, %v1785
        %v1787 = vsel %vm549, %v1726, 0.0
        %v1788 = vadd.f32 %v1786, %v1787
        %v1789 = vsel %vm549, %v1727, 0.0
        %v1790 = vadd.f32 %v1788, %v1789
        %v1791 = vrot.slane %v1790, 4
        %v1792 = vadd.f32 %v1790, %v1791
        %v1793 = vrot.slane %v1792, 2
        %v1794 = vadd.f32 %v1792, %v1793
        %v1795 = vrot.slane %v1794, 1
        %v1796 = vadd.f32 %v1794, %v1795
        %v1797 = vld [vmem:[%s10] sm:$0xff]
        %v1798 = vld [vmem:[%s10 + $0x8] sm:$0xff]
        %v1799 = vld [vmem:[%s11] sm:$0x1]
        %v1801 = vsel %vm549, %v1796, 0
        %1803 = vmatpush.msra.mxu0 0.0
        %1804 = vmatpush.msra.mxu0 0.0
        %1805 = vmatpush.msra.mxu0 0.0
        %1806 = vmatpush.msra.mxu0 0.0
        %1807 = vmatpush.msra.mxu0 0.0
        %1808 = vmatpush.msra.mxu0 0.0
        %1809 = vmatpush.msra.mxu0 0.0
        %1810 = vmatpush.msra.mxu0 0.0
        %1811 = vmatpush.msra.mxu0 0.0
        %1812 = vmatpush.msra.mxu0 0.0
        %1813 = vmatpush.msra.mxu0 0.0
        %1814 = vmatpush.msra.mxu0 0.0
        %1815 = vmatpush.msra.mxu0 0.0
        %1816 = vmatpush.msra.mxu0 0.0
        %1817 = vmatpush.msra.mxu0 %v1798
        %1818 = vmatpush.msra.mxu0 %v1797
        %1819 = vmatmul.f32.gmra.mxu0 %v1801
        %v1820 = vpop.f32.mrf.mxu0
        %v1821 = vadd.f32 %v1799, %v1820
        %1822 = vdwg.mxu0
        %vm1823 = vcmask 122880
        %1824 = vst.msk [vmem:[%s470] sm:$0x1] %vm1823, %v1821
        %s1825 = sand.u32 %s340, 1
        %s1826 = scalar_lea.sflag [#allocation3], %s1825
        %s1827 = sand.u32 %s340, 1
        %s1828 = scalar_lea.vmem [#allocation2], %s1827
        // Predicated region
        $region77: #{tpu_custom_call.1} parent=75 // pred_check
          %p1829 = pneg %p350
        $region78: #{tpu_custom_call.1} parent=75 // pred_check_branch
          %1831 = sbr.rel (%p1829) target = $region80
        $region79: #{tpu_custom_call.1} parent=75 // pred_region
          %1833 = vsyncadd %s1826, 0
          %s1834 = scalar_lea.hbm %s14, %s28
          %s1836 = sshll.u32 %s1828, 4
          %s1837 = int_to_ptr.vmem [resolvable:$true] %s1836
          %s1838 = sshll.u32 %s1834, 4
          %s1839 = int_to_ptr.hbm [resolvable:$true] %s1838
          %1841 = dma.vmem_to_hbm [thread:$0]  %s1837, 16, %s1839, %s1826
        $region80: #{tpu_custom_call.1} parent=75 // pred_fallthru
          _
      $region76: #{tpu_custom_call.1} parent=5 // pred_fallthru
        _
      %p1842 = scmp.le.s32.totalorder 2, %s23
      // Predicated region
      $region81: #{tpu_custom_call.1} parent=5 // pred_check
        %p1843 = pneg %p1842
      $region82: #{tpu_custom_call.1} parent=5 // pred_check_branch
        %1845 = sbr.rel (%p1843) target = $region84
      $region83: #{tpu_custom_call.1} parent=5 // pred_region
        %s1846 = ssub.s32 %s23, 2
        // Predicated region
        $region85: #{tpu_custom_call.1} parent=83 // pred_check
          %p1847 = pneg %p356
        $region86: #{tpu_custom_call.1} parent=83 // pred_check_branch
          %1849 = sbr.rel (%p1847) target = $region88
        $region87: #{tpu_custom_call.1} parent=83 // pred_region
          %s1850 = sand.u32 %s341, 1
          %s1851 = scalar_lea.sflag [#allocation3], %s1850
          %s1852 = sand.u32 %s341, 1
          %s1853 = scalar_lea.vmem [#allocation2], %s1852
          %1855 = dma.done %s1851, 16
        $region88: #{tpu_custom_call.1} parent=83 // pred_fallthru
          _
      $region84: #{tpu_custom_call.1} parent=5 // pred_fallthru
        _
    $region6: #{tpu_custom_call.1} parent=1 // loop_footer
      %s27 = sadd.s32 1, %s23
    $region7: #{tpu_custom_call.1} parent=1 // loop_footer_branch
      %22 = sbr.rel target = $region3
    $region8: #{tpu_custom_call.1} parent=1 // loop_exit
      _
    %1856 = vsyncpa [#allocation3], 1
    %s1857 = scalar_lea.sflag [#allocation3], 1
    %1858 = vsyncpa %s1857, 1

</llo_original>
